<compile_context>
chip_gen: v7x
topology: tpu7x:2x2x1
jax: 0.10.0
libtpu: 0.0.40
codegen_flags: <defaults>
</compile_context>

<pallas_src>
import math

import jax
import jax.numpy as jnp
from jax.experimental import pallas as pl
from jax.experimental.pallas import tpu as pltpu

TWO_PI = 2.0 * math.pi


def _ffm_kernel(x_ref, bt_ref, o_ref):
    # x_ref : (C, hw_blk)   channels on sublanes, pixels on lanes
    # bt_ref: (M, C)        transposed Fourier-feature matrix (tiny, resident)
    # o_ref : (2M, hw_blk)  rows [0, M) = sin, rows [M, 2M) = cos
    c = x_ref.shape[0]
    m = bt_ref.shape[0]

    bt = bt_ref[...] * TWO_PI                      # fold 2*pi into the tiny weight tile

    # K = C contraction as VPU broadcast-FMAs:
    #   y[m, n] = sum_c (2*pi*B[c, m]) * x[c, n]
    y = bt[:, 0:1] * x_ref[0:1, :]                 # (M, 1) * (1, hw) -> (M, hw)
    for ci in range(1, c):                         # static, c == 4
        y = y + bt[:, ci:ci + 1] * x_ref[ci:ci + 1, :]

    o_ref[0:m, :] = jnp.sin(y)                     # static-slice stores, no concat copy
    o_ref[m:2 * m, :] = jnp.cos(y)


def _pick_hw_block(hw, max_block=2048):
    """Largest spatial block <= max_block that tiles hw (full extent if small)."""
    if hw <= max_block:
        return hw
    for cand in range(max_block, 127, -128):
        if hw % cand == 0:
            return cand
    return hw  # fallback: single full-extent block


def ffm_forward(x, b_mat):
    """x: (B, C, W, H) float32; b_mat: (C, M) float32 -> (B, 2M, W, H) float32."""
    B, C, W, H = x.shape
    M = b_mat.shape[1]
    hw = W * H
    hw_blk = _pick_hw_block(hw)
    n_hw = hw // hw_blk

    x2 = x.reshape(B, C, hw)                       # free reshape (no transpose)
    bt = jnp.transpose(b_mat, (1, 0))              # (M, C), tiny

    out = pl.pallas_call(
        _ffm_kernel,
        out_shape=jax.ShapeDtypeStruct((B, 2 * M, hw), jnp.float32),
        grid=(B, n_hw),
        in_specs=[
            pl.BlockSpec((None, C, hw_blk), lambda b, s: (b, 0, s)),
            pl.BlockSpec((M, C), lambda b, s: (0, 0)),
        ],
        out_specs=pl.BlockSpec((None, 2 * M, hw_blk), lambda b, s: (b, 0, s)),
        compiler_params=pltpu.CompilerParams(
            dimension_semantics=("parallel", "parallel")),
    )(x2, bt)

    return out.reshape(B, 2 * M, W, H)             # free reshape


if __name__ == "__main__":
    # FFM(input_channels=4, mapping_size=32, scale=20) at batch=2, spatial 16x16
    B, C, W, H = 2, 4, 16, 16
    mapping_size = 32
    scale = 20.0

    key = jax.random.PRNGKey(0)
    kb, kx = jax.random.split(key)
    b_mat = scale * jax.random.normal(kb, (C, mapping_size), jnp.float32)   # fixed _B buffer
    x = jax.random.normal(kx, (B, C, W, H), jnp.float32)

    fwd = jax.jit(lambda xx: ffm_forward(xx, b_mat))
    out = fwd(x)
    jax.block_until_ready(out)

    assert out.shape == (B, 2 * mapping_size, W, H), out.shape
    assert bool(jnp.all(jnp.isfinite(out)))

    # Pure-JAX reference of the PyTorch forward (exact f32 contraction to match
    # the kernel's VPU FMAs; avoids default-precision matmul discrepancies).
    xp = jnp.transpose(x, (0, 2, 3, 1)).reshape(B * W * H, C)               # (N, C)
    y_ref = jnp.sum(xp[:, :, None] * b_mat[None, :, :], axis=1)             # (N, M)
    y_ref = y_ref.reshape(B, W, H, mapping_size)
    y_ref = jnp.transpose(y_ref, (0, 3, 1, 2)) * TWO_PI                     # (B, M, W, H)
    ref = jnp.concatenate([jnp.sin(y_ref), jnp.cos(y_ref)], axis=1)
    max_err = float(jnp.max(jnp.abs(out - ref)))
    assert max_err < 5e-3, max_err

    print("KERNEL_OK")
</pallas_src>

<mosaic_0001>
module attributes {stable_mosaic.version = 11 : i64} {
  func.func @_ffm_kernel(%arg0: i32, %arg1: i32, %arg2: memref<1x4x256xf32, #tpu.memory_space<vmem>>, %arg3: memref<32x4xf32, #tpu.memory_space<vmem>>, %arg4: memref<1x64x256xf32, #tpu.memory_space<vmem>>) attributes {dimension_semantics = [#tpu.dimension_semantics<parallel>, #tpu.dimension_semantics<parallel>], iteration_bounds = array<i64: 2, 1>, scalar_prefetch = 0 : i64, scratch_operands = 0 : i64, tpu.core_type = #tpu.core_type<tc>, window_params = [{transform_indices = @transform_0, window_bounds = array<i64: 1, 4, 256>}, {pipeline_mode = #tpu.pipeline_mode<synchronous>, transform_indices = @transform_1, window_bounds = array<i64: 32, 4>}, {transform_indices = @transform_2, window_bounds = array<i64: 1, 64, 256>}]} {
    %c0 = arith.constant 0 : index
    %c0_0 = arith.constant 0 : index
    %0 = vector.load %arg3[%c0, %c0_0] : memref<32x4xf32, #tpu.memory_space<vmem>>, vector<32x4xf32>
    %cst = arith.constant 6.28318548 : f32
    %1 = vector.broadcast %cst : f32 to vector<32x4xf32>
    %2 = arith.mulf %0, %1 : vector<32x4xf32>
    %3 = vector.extract_strided_slice %2 {offsets = [0, 0], sizes = [32, 1], strides = [1, 1]} : vector<32x4xf32> to vector<32x1xf32>
    %c0_1 = arith.constant 0 : index
    %c0_2 = arith.constant 0 : index
    %c0_3 = arith.constant 0 : index
    %4 = vector.load %arg2[%c0_1, %c0_2, %c0_3] : memref<1x4x256xf32, #tpu.memory_space<vmem>>, vector<1x1x256xf32>
    %5 = vector.shape_cast %4 : vector<1x1x256xf32> to vector<1x256xf32>
    %6 = vector.broadcast %3 : vector<32x1xf32> to vector<32x256xf32>
    %7 = vector.broadcast %5 : vector<1x256xf32> to vector<32x256xf32>
    %8 = arith.mulf %6, %7 : vector<32x256xf32>
    %9 = vector.extract_strided_slice %2 {offsets = [0, 1], sizes = [32, 1], strides = [1, 1]} : vector<32x4xf32> to vector<32x1xf32>
    %c0_4 = arith.constant 0 : index
    %c1 = arith.constant 1 : index
    %c0_5 = arith.constant 0 : index
    %10 = vector.load %arg2[%c0_4, %c1, %c0_5] : memref<1x4x256xf32, #tpu.memory_space<vmem>>, vector<1x1x256xf32>
    %11 = vector.shape_cast %10 : vector<1x1x256xf32> to vector<1x256xf32>
    %12 = vector.broadcast %9 : vector<32x1xf32> to vector<32x256xf32>
    %13 = vector.broadcast %11 : vector<1x256xf32> to vector<32x256xf32>
    %14 = arith.mulf %12, %13 : vector<32x256xf32>
    %15 = arith.addf %8, %14 : vector<32x256xf32>
    %16 = vector.extract_strided_slice %2 {offsets = [0, 2], sizes = [32, 1], strides = [1, 1]} : vector<32x4xf32> to vector<32x1xf32>
    %c0_6 = arith.constant 0 : index
    %c2 = arith.constant 2 : index
    %c0_7 = arith.constant 0 : index
    %17 = vector.load %arg2[%c0_6, %c2, %c0_7] : memref<1x4x256xf32, #tpu.memory_space<vmem>>, vector<1x1x256xf32>
    %18 = vector.shape_cast %17 : vector<1x1x256xf32> to vector<1x256xf32>
    %19 = vector.broadcast %16 : vector<32x1xf32> to vector<32x256xf32>
    %20 = vector.broadcast %18 : vector<1x256xf32> to vector<32x256xf32>
    %21 = arith.mulf %19, %20 : vector<32x256xf32>
    %22 = arith.addf %15, %21 : vector<32x256xf32>
    %23 = vector.extract_strided_slice %2 {offsets = [0, 3], sizes = [32, 1], strides = [1, 1]} : vector<32x4xf32> to vector<32x1xf32>
    %c0_8 = arith.constant 0 : index
    %c3 = arith.constant 3 : index
    %c0_9 = arith.constant 0 : index
    %24 = vector.load %arg2[%c0_8, %c3, %c0_9] : memref<1x4x256xf32, #tpu.memory_space<vmem>>, vector<1x1x256xf32>
    %25 = vector.shape_cast %24 : vector<1x1x256xf32> to vector<1x256xf32>
    %26 = vector.broadcast %23 : vector<32x1xf32> to vector<32x256xf32>
    %27 = vector.broadcast %25 : vector<1x256xf32> to vector<32x256xf32>
    %28 = arith.mulf %26, %27 : vector<32x256xf32>
    %29 = arith.addf %22, %28 : vector<32x256xf32>
    %30 = math.sin %29 : vector<32x256xf32>
    %c0_10 = arith.constant 0 : index
    %c0_11 = arith.constant 0 : index
    %c0_12 = arith.constant 0 : index
    %31 = vector.load %arg4[%c0_10, %c0_11, %c0_12] : memref<1x64x256xf32, #tpu.memory_space<vmem>>, vector<1x32x256xf32>
    %32 = vector.shape_cast %31 : vector<1x32x256xf32> to vector<32x256xf32>
    %33 = vector.shape_cast %30 : vector<32x256xf32> to vector<1x32x256xf32>
    tpu.vector_store %arg4[%c0_10, %c0_11, %c0_12], %33 {strides = array<i32>} : memref<1x64x256xf32, #tpu.memory_space<vmem>>, vector<1x32x256xf32>,
    %34 = math.cos %29 : vector<32x256xf32>
    %c0_13 = arith.constant 0 : index
    %c32 = arith.constant 32 : index
    %c0_14 = arith.constant 0 : index
    %35 = vector.load %arg4[%c0_13, %c32, %c0_14] : memref<1x64x256xf32, #tpu.memory_space<vmem>>, vector<1x32x256xf32>
    %36 = vector.shape_cast %35 : vector<1x32x256xf32> to vector<32x256xf32>
    %37 = vector.shape_cast %34 : vector<32x256xf32> to vector<1x32x256xf32>
    tpu.vector_store %arg4[%c0_13, %c32, %c0_14], %37 {strides = array<i32>} : memref<1x64x256xf32, #tpu.memory_space<vmem>>, vector<1x32x256xf32>,
    return
  }
  func.func @transform_0(%arg0: i32, %arg1: i32) -> (i32, i32, i32) {
    %c0_i32 = arith.constant 0 : i32
    %c0_i32_0 = arith.constant 0 : i32
    return %arg0, %c0_i32, %arg1 : i32, i32, i32
  }
  func.func @transform_1(%arg0: i32, %arg1: i32) -> (i32, i32) {
    %c0_i32 = arith.constant 0 : i32
    %c0_i32_0 = arith.constant 0 : i32
    %c0_i32_1 = arith.constant 0 : i32
    return %c0_i32, %c0_i32_0 : i32, i32
  }
  func.func @transform_2(%arg0: i32, %arg1: i32) -> (i32, i32, i32) {
    %c0_i32 = arith.constant 0 : i32
    %c0_i32_0 = arith.constant 0 : i32
    return %arg0, %c0_i32, %arg1 : i32, i32, i32
  }
}

</mosaic_0001>

<llo_original>
// kernel: _lambda_.1
$region0: #{_lambda_.1}
  #allocation0 [shape = 'u32[]', space=smem, size = 0x4, offset = 0x4, fixed_abs, tag = 'smem constant byte address 0x4 - core index']
  #allocation1 [shape = 'u32[144,128]{1,0:T(1,128)}', space=vmem, size = 0x12000, scoped, tag = 'internal scratch']
  %s0 = inlined_call_operand.vmem [shape: f32[2,4,256], index: 0, kind: input, shape index: {}]
  %s1 = inlined_call_operand.vmem [shape: f32[32,4], index: 1, kind: input, shape index: {}]
  %s2 = inlined_call_operand.vmem [shape: f32[2,64,256], index: 2, kind: output, shape index: {}]
  %s3 = sld [smem:[#allocation0]]
  $region41: #{_lambda_.1} parent=0
    _
  %s5 = ssub.s32 1, %s3
  %s6 = scalar_select 0, %s5, %s3
  loop: start=0, step=1, limit=4
  $region2: #{_lambda_.1} parent=0 // loop_pre_header
    _
  $region3: #{_lambda_.1} parent=0 // loop_header
    %s8 = sphi 0, %s12
    %p9 = scmp.ge.s32.totalorder %s8, 4
    %s15 = sphi 0, %s27
    %s16 = sphi 0, %s23
    %s17 = sphi 0, %s15
    %s18 = sphi 0, %s16
    %s19 = sphi 0, %s17
    %s20 = sphi 0, %s18
    %s32 = sphi 0, %s34
    %s35 = sphi 0, %s32
    %s36 = sphi 0, %s35
    %s52 = sphi 0, %s36
    %s56 = sphi 0, %s56
    %s58 = sphi 0, %s56
    %s59 = sphi 0, %s58
    %s73 = sphi 0, %s59
    %s81 = sphi 0, %s83
    %s84 = sphi 0, %s81
    %s85 = sphi 0, %s84
    %s101 = sphi 0, %s85
  $region4: #{_lambda_.1} parent=0 // loop_header_branch
    %11 = sbr.rel (%p9) target = $region8
  $region5: #{_lambda_.1} parent=0 // loop_body
    %s13 = ssub.s32 %s8, 1
    %s14 = ssub.s32 %s8, 2
    %s21 = sadd.s32 1, %s16
    %p22 = scmp.ge.s32.totalorder %s21, 1
    %s23 = scalar_select %p22, 0, %s21
    %s24 = sadd.s32 1, %s15
    %s25 = scalar_select %p22, %s24, %s15
    %p26 = scmp.ge.s32.totalorder %s25, 2
    %s27 = scalar_select %p26, 0, %s25
    %s28 = ssub.s32 %s15, %s27
    %s29 = ssub.s32 %s16, %s23
    %s30 = sor.u32 %s28, %s29
    %p31 = scmp.eq.s32.totalorder %s30, 0
    %s33 = sadd.s32 %s32, 1
    %s34 = scalar_select %p31, %s32, %s33
    %p37 = pneg %p31
    %p38 = scmp.eq.s32.totalorder %s8, 1
    %p39 = por %p37, %p38
    %p40 = scmp.ne.s32.totalorder %s32, %s35
    %p41 = scmp.eq.s32.totalorder %s8, 0
    %p42 = por %p40, %p41
    %p43 = scmp.ne.s32.totalorder %s32, %s35
    %p44 = scmp.eq.s32.totalorder %s13, 1
    %p45 = por %p43, %p44
    %p46 = scmp.ne.s32.totalorder %s35, %s36
    %p47 = scmp.eq.s32.totalorder %s13, 0
    %p48 = por %p46, %p47
    %p49 = scmp.ne.s32.totalorder %s35, %s36
    %p50 = scmp.eq.s32.totalorder %s14, 1
    %p51 = por %p49, %p50
    %p53 = scmp.ne.s32.totalorder %s36, %s52
    %p54 = scmp.eq.s32.totalorder %s14, 0
    %p55 = por %p53, %p54
    %s57 = sadd.s32 %s56, 1
    %p60 = scmp.eq.s32.totalorder %s8, 1
    %p61 = scmp.ne.s32.totalorder %s56, %s58
    %p62 = scmp.eq.s32.totalorder %s8, 0
    %p63 = por %p61, %p62
    %p64 = scmp.ne.s32.totalorder %s56, %s58
    %p65 = scmp.eq.s32.totalorder %s13, 1
    %p66 = por %p64, %p65
    %p67 = scmp.ne.s32.totalorder %s58, %s59
    %p68 = scmp.eq.s32.totalorder %s13, 0
    %p69 = por %p67, %p68
    %p70 = scmp.ne.s32.totalorder %s58, %s59
    %p71 = scmp.eq.s32.totalorder %s14, 1
    %p72 = por %p70, %p71
    %p74 = scmp.ne.s32.totalorder %s59, %s73
    %p75 = scmp.eq.s32.totalorder %s14, 0
    %p76 = por %p74, %p75
    %s77 = ssub.s32 %s15, %s27
    %s78 = ssub.s32 %s16, %s23
    %s79 = sor.u32 %s77, %s78
    %p80 = scmp.eq.s32.totalorder %s79, 0
    %s82 = sadd.s32 %s81, 1
    %s83 = scalar_select %p80, %s81, %s82
    %p86 = pneg %p80
    %p87 = scmp.eq.s32.totalorder %s8, 1
    %p88 = por %p86, %p87
    %p89 = scmp.ne.s32.totalorder %s81, %s84
    %p90 = scmp.eq.s32.totalorder %s8, 0
    %p91 = por %p89, %p90
    %p92 = scmp.ne.s32.totalorder %s81, %s84
    %p93 = scmp.eq.s32.totalorder %s13, 1
    %p94 = por %p92, %p93
    %p95 = scmp.ne.s32.totalorder %s84, %s85
    %p96 = scmp.eq.s32.totalorder %s13, 0
    %p97 = por %p95, %p96
    %p98 = scmp.ne.s32.totalorder %s84, %s85
    %p99 = scmp.eq.s32.totalorder %s14, 1
    %p100 = por %p98, %p99
    %p102 = scmp.ne.s32.totalorder %s85, %s101
    %p103 = scmp.eq.s32.totalorder %s14, 0
    %p104 = por %p102, %p103
    %p105 = scmp.le.s32.totalorder 1, %s8
    %p106 = scmp.lt.s32.totalorder %s8, 3
    %p107 = pnand %p105, %p106
    %p108 = pneg %p107
    // Predicated region
    $region9: #{_lambda_.1} parent=5 // pred_check
      _
    $region10: #{_lambda_.1} parent=5 // pred_check_branch
      %110 = sbr.rel (%p107) target = $region12
    $region11: #{_lambda_.1} parent=5 // pred_region
      %s111 = ssub.s32 %s8, 1
      // Predicated region
      $region13: #{_lambda_.1} parent=11 // pred_check
        %p112 = pneg %p69
      $region14: #{_lambda_.1} parent=11 // pred_check_branch
        %114 = sbr.rel (%p112) target = $region16
      $region15: #{_lambda_.1} parent=11 // pred_region
        _
      $region16: #{_lambda_.1} parent=11 // pred_fallthru
        _
    $region12: #{_lambda_.1} parent=5 // pred_fallthru
      _
    %p115 = scmp.lt.s32.totalorder %s8, 2
    // Predicated region
    $region17: #{_lambda_.1} parent=5 // pred_check
      %p116 = pneg %p115
    $region18: #{_lambda_.1} parent=5 // pred_check_branch
      %118 = sbr.rel (%p116) target = $region20
    $region19: #{_lambda_.1} parent=5 // pred_region
      // Predicated region
      $region21: #{_lambda_.1} parent=19 // pred_check
        %p119 = pneg %p42
      $region22: #{_lambda_.1} parent=19 // pred_check_branch
        %121 = sbr.rel (%p119) target = $region24
      $region23: #{_lambda_.1} parent=19 // pred_region
        %s122 = smul.u32 2, %s16
        %p123 = scmp.lt.s32.totalorder %s15, 1
        %s124 = scalar_select %p123, %s15, 1
        %p125 = scmp.lt.s32.totalorder %s122, 1
        %s126 = scalar_select %p125, %s122, 1
        %s127 = smul.addr %s124, 2
        %s128 = sadd.s32 %s126, %s127
        %s129 = smul.addr %s128, 4
        %s130 = scalar_lea.vmem %s0, %s129
        %s131 = smul.u32 2, %s16
      $region24: #{_lambda_.1} parent=19 // pred_fallthru
        _
    $region20: #{_lambda_.1} parent=5 // pred_fallthru
      _
    %p132 = scmp.le.s32.totalorder 1, %s8
    %p133 = scmp.lt.s32.totalorder %s8, 3
    %p134 = pnand %p132, %p133
    %p135 = pneg %p134
    // Predicated region
    $region25: #{_lambda_.1} parent=5 // pred_check
      _
    $region26: #{_lambda_.1} parent=5 // pred_check_branch
      %137 = sbr.rel (%p134) target = $region28
    $region27: #{_lambda_.1} parent=5 // pred_region
      %s138 = ssub.s32 %s8, 1
      %s139 = smul.u32 2, %s18
      %p140 = scmp.lt.s32.totalorder %s17, 1
      %s141 = scalar_select %p140, %s17, 1
      %p142 = scmp.lt.s32.totalorder %s139, 1
      %s143 = scalar_select %p142, %s139, 1
      %s144 = smul.addr %s141, 2
      %s145 = sadd.s32 %s143, %s144
      %s146 = smul.addr %s145, 4
      %s147 = scalar_lea.vmem %s0, %s146
      %p148 = pneg %p48
      %p149 = pneg %p45
      %p150 = pneg %p69
      %p151 = pneg %p66
      %p152 = pneg %p97
      %p153 = pneg %p94
      %s154 = smul.u32 2, %s18
      %p155 = scmp.lt.s32.totalorder %s17, 1
      %s156 = scalar_select %p155, %s17, 1
      %p157 = scmp.lt.s32.totalorder %s154, 1
      %s158 = scalar_select %p157, %s154, 1
      %s159 = smul.addr %s156, 16
      %s160 = sadd.s32 %s158, %s159
      %s161 = smul.addr %s160, 8
      %s162 = scalar_lea.vmem %s2, %s161
      %s163 = smul.u32 2, %s18
      %p164 = scmp.lt.s32.totalorder %s17, 1
      %s165 = scalar_select %p164, %s17, 1
      %p166 = scmp.lt.s32.totalorder %s163, 1
      %s167 = scalar_select %p166, %s163, 1
      %s168 = smul.addr %s165, 2
      %s169 = sadd.s32 %s167, %s168
      %s170 = smul.addr %s169, 4
      %s171 = scalar_lea.vmem %s0, %s170
      %s172 = smul.u32 2, %s18
      %s173 = smul.u32 2, %s18
      %p174 = scmp.lt.s32.totalorder %s17, 1
      %s175 = scalar_select %p174, %s17, 1
      %p176 = scmp.lt.s32.totalorder %s173, 1
      %s177 = scalar_select %p176, %s173, 1
      %s178 = smul.addr %s175, 16
      %s179 = sadd.s32 %s177, %s178
      %s180 = smul.addr %s179, 8
      %s181 = scalar_lea.vmem %s2, %s180
      %s182 = smul.u32 2, %s18
      %v183 = vld [vmem:[%s1] sm:$0xff]
      %v184 = vld [vmem:[%s1 + $0x8] sm:$0xff]
      %v185 = vld [vmem:[%s1 + $0x10] sm:$0xff]
      %v186 = vld [vmem:[%s1 + $0x18] sm:$0xff]
      %v187 = vmul.f32 %v183, 6.2831855
      %v188 = vmul.f32 %v184, 6.2831855
      %v189 = vmul.f32 %v185, 6.2831855
      %v190 = vmul.f32 %v186, 6.2831855
      %v191 = vld [vmem:[%s171] ss:$4 sm:$0x3]
      %193 = vset.pattern.permute.xlu0 0
      %194 = vperm.xlu0 %193, %v187
      %v195 = vpop.permute.xlu0 %194
      %198 = vset.pattern.permute.xlu0 0
      %199 = vperm.xlu0 %198, %v188
      %v200 = vpop.permute.xlu0 %199
      %203 = vset.pattern.permute.xlu0 0
      %204 = vperm.xlu0 %203, %v189
      %v205 = vpop.permute.xlu0 %204
      %208 = vset.pattern.permute.xlu0 0
      %209 = vperm.xlu0 %208, %v190
      %v210 = vpop.permute.xlu0 %209
      %v213 = vlaneseq
      %v214 = vshrl.u32 %v213, 7
      %v215 = vsub.s32 0, %v214
      %v216 = vrot.slane %v191, %v215
      %v217 = vlaneseq
      %v218 = vshrl.u32 %v217, 7
      %v219 = vsub.s32 1, %v218
      %v220 = vrot.slane %v191, %v219
      %v223 = vmul.f32 %v195, %v216
      %v224 = vmul.f32 %v195, %v220
      %v225 = vmul.f32 %v200, %v216
      %v226 = vmul.f32 %v200, %v220
      %v227 = vmul.f32 %v205, %v216
      %v228 = vmul.f32 %v205, %v220
      %v229 = vmul.f32 %v210, %v216
      %v230 = vmul.f32 %v210, %v220
      %s231 = scalar_lea.vmem %s171, 1
      %v232 = vld [vmem:[%s231] ss:$4 sm:$0x3]
      %233 = vset.pattern.permute.xlu0 1
      %234 = vperm.xlu0 %233, %v187
      %v235 = vpop.permute.xlu0 %234
      %237 = vset.pattern.permute.xlu0 1
      %238 = vperm.xlu0 %237, %v188
      %v239 = vpop.permute.xlu0 %238
      %241 = vset.pattern.permute.xlu0 1
      %242 = vperm.xlu0 %241, %v189
      %v243 = vpop.permute.xlu0 %242
      %245 = vset.pattern.permute.xlu0 1
      %246 = vperm.xlu0 %245, %v190
      %v247 = vpop.permute.xlu0 %246
      %v250 = vlaneseq
      %v251 = vshrl.u32 %v250, 7
      %v252 = vsub.s32 0, %v251
      %v253 = vrot.slane %v232, %v252
      %v254 = vlaneseq
      %v255 = vshrl.u32 %v254, 7
      %v256 = vsub.s32 1, %v255
      %v257 = vrot.slane %v232, %v256
      %v260 = vmul.f32 %v235, %v253
      %v261 = vmul.f32 %v235, %v257
      %v262 = vmul.f32 %v239, %v253
      %v263 = vmul.f32 %v239, %v257
      %v264 = vmul.f32 %v243, %v253
      %v265 = vmul.f32 %v243, %v257
      %v266 = vmul.f32 %v247, %v253
      %v267 = vmul.f32 %v247, %v257
      %v268 = vadd.f32 %v223, %v260
      %v269 = vadd.f32 %v224, %v261
      %v270 = vadd.f32 %v225, %v262
      %v271 = vadd.f32 %v226, %v263
      %v272 = vadd.f32 %v227, %v264
      %v273 = vadd.f32 %v228, %v265
      %v274 = vadd.f32 %v229, %v266
      %v275 = vadd.f32 %v230, %v267
      %s276 = scalar_lea.vmem %s171, 2
      %v277 = vld [vmem:[%s276] ss:$4 sm:$0x3]
      %278 = vset.pattern.permute.xlu0 2
      %279 = vperm.xlu0 %278, %v187
      %v280 = vpop.permute.xlu0 %279
      %282 = vset.pattern.permute.xlu0 2
      %283 = vperm.xlu0 %282, %v188
      %v284 = vpop.permute.xlu0 %283
      %286 = vset.pattern.permute.xlu0 2
      %287 = vperm.xlu0 %286, %v189
      %v288 = vpop.permute.xlu0 %287
      %290 = vset.pattern.permute.xlu0 2
      %291 = vperm.xlu0 %290, %v190
      %v292 = vpop.permute.xlu0 %291
      %v295 = vlaneseq
      %v296 = vshrl.u32 %v295, 7
      %v297 = vsub.s32 0, %v296
      %v298 = vrot.slane %v277, %v297
      %v299 = vlaneseq
      %v300 = vshrl.u32 %v299, 7
      %v301 = vsub.s32 1, %v300
      %v302 = vrot.slane %v277, %v301
      %v305 = vmul.f32 %v280, %v298
      %v306 = vmul.f32 %v280, %v302
      %v307 = vmul.f32 %v284, %v298
      %v308 = vmul.f32 %v284, %v302
      %v309 = vmul.f32 %v288, %v298
      %v310 = vmul.f32 %v288, %v302
      %v311 = vmul.f32 %v292, %v298
      %v312 = vmul.f32 %v292, %v302
      %v313 = vadd.f32 %v268, %v305
      %v314 = vadd.f32 %v269, %v306
      %v315 = vadd.f32 %v270, %v307
      %v316 = vadd.f32 %v271, %v308
      %v317 = vadd.f32 %v272, %v309
      %v318 = vadd.f32 %v273, %v310
      %v319 = vadd.f32 %v274, %v311
      %v320 = vadd.f32 %v275, %v312
      %s321 = scalar_lea.vmem %s171, 3
      %v322 = vld [vmem:[%s321] ss:$4 sm:$0x3]
      %323 = vset.pattern.permute.xlu0 3
      %324 = vperm.xlu0 %323, %v187
      %v325 = vpop.permute.xlu0 %324
      %327 = vset.pattern.permute.xlu0 3
      %328 = vperm.xlu0 %327, %v188
      %v329 = vpop.permute.xlu0 %328
      %331 = vset.pattern.permute.xlu0 3
      %332 = vperm.xlu0 %331, %v189
      %v333 = vpop.permute.xlu0 %332
      %335 = vset.pattern.permute.xlu0 3
      %336 = vperm.xlu0 %335, %v190
      %v337 = vpop.permute.xlu0 %336
      %v340 = vlaneseq
      %v341 = vshrl.u32 %v340, 7
      %v342 = vsub.s32 0, %v341
      %v343 = vrot.slane %v322, %v342
      %v344 = vlaneseq
      %v345 = vshrl.u32 %v344, 7
      %v346 = vsub.s32 1, %v345
      %v347 = vrot.slane %v322, %v346
      %v350 = vmul.f32 %v325, %v343
      %v351 = vmul.f32 %v325, %v347
      %v352 = vmul.f32 %v329, %v343
      %v353 = vmul.f32 %v329, %v347
      %v354 = vmul.f32 %v333, %v343
      %v355 = vmul.f32 %v333, %v347
      %v356 = vmul.f32 %v337, %v343
      %v357 = vmul.f32 %v337, %v347
      %v358 = vadd.f32 %v313, %v350
      %v359 = vadd.f32 %v314, %v351
      %v360 = vadd.f32 %v315, %v352
      %v361 = vadd.f32 %v316, %v353
      %v362 = vadd.f32 %v317, %v354
      %v363 = vadd.f32 %v318, %v355
      %v364 = vadd.f32 %v319, %v356
      %v365 = vadd.f32 %v320, %v357
      %v366 = vand.u32 2147483647, %v358
      %vm367 = vcmp.le.f32.partialorder %v366, 0.7853982
      %vm368 = vcmp.lt.s32.totalorder %v358, 0
      %v369 = vand.u32 %v358, 2139095040
      %v370 = vshrl.u32 %v369, 23
      %v371 = vsub.s32 %v370, 127
      %v372 = vand.u32 2147483647, %v358
      %v373 = vand.u32 %v372, 8388607
      %v374 = vor.u32 %v373, 8388608
      %v375 = vsub.s32 0, %v374
      %v376 = vadd.s32 %v371, 1
      %vm377 = vcmp.gt.s32.totalorder %v376, 0
      %v378 = vsel %vm377, %v376, 0
      %v379 = vshrl.u32 %v378, 5
      %v380 = vand.u32 %v378, 31
      %v381 = vsub.s32 32, %v380
      %v382 = vshrl.u32 683565275, %v381
      %v383 = vshll.u32 683565275, %v380
      %v384 = vshrl.u32 2475754826, %v381
      %v385 = vor.u32 %v383, %v384
      %v386 = vshll.u32 2475754826, %v380
      %v387 = vshrl.u32 2131351028, %v381
      %v388 = vor.u32 %v386, %v387
      %v389 = vshll.u32 2131351028, %v380
      %v390 = vshrl.u32 2102212464, %v381
      %v391 = vor.u32 %v389, %v390
      %v392 = vshll.u32 2102212464, %v380
      %v393 = vshrl.u32 920167782, %v381
      %v394 = vor.u32 %v392, %v393
      %v395 = vshll.u32 920167782, %v380
      %v396 = vshrl.u32 1326507024, %v381
      %v397 = vor.u32 %v395, %v396
      %vm398 = vcmp.lt.s32.totalorder %v379, 1
      %vm399 = vcmp.lt.s32.totalorder %v379, 2
      %vm400 = vcmp.lt.s32.totalorder %v379, 3
      %vm401 = vcmp.lt.s32.totalorder %v379, 4
      %v402 = vsel %vm398, %v382, %v385
      %v403 = vsel %vm401, %v391, 2102212464
      %v404 = vsel %vm400, %v388, %v403
      %v405 = vsel %vm399, %v402, %v404
      %v406 = vsel %vm398, %v385, %v388
      %v407 = vsel %vm401, %v394, 920167782
      %v408 = vsel %vm400, %v391, %v407
      %v409 = vsel %vm399, %v406, %v408
      %v410 = vsel %vm398, %v388, %v391
      %v411 = vsel %vm401, %v397, 1326507024
      %v412 = vsel %vm400, %v394, %v411
      %v413 = vsel %vm399, %v410, %v412
      %v414 = vshll.u32 %v374, 8
      %v415 = vmul.u32.u64.compose %v414, %v413
      %v416 = vextract.low.u32 %v415
      %v417 = vextract.high.u32 %v415
      %v418 = vmul.u32.u64.compose %v414, %v409
      %v419 = vextract.low.u32 %v418
      %v420 = vextract.high.u32 %v418
      %v421 = vmul.u32 %v414, %v405
      %v422 = vadd.s32 %v417, %v419
      %vm423 = vc.u32 %v417, %v419
      %v424 = vadd.s32 %v420, 1
      %v425 = vsel %vm423, %v424, %v420
      %v426 = vadd.s32 %v421, %v425
      %v427 = vadd.s32 %v426, 536870912
      %v428 = vshrl.u32 %v427, 30
      %v429 = vshll.u32 %v428, 30
      %v430 = vsub.s32 %v426, %v429
      %vm431 = vcmp.lt.s32.totalorder %v430, 0
      %v432 = vsub.s32 0, %v430
      %v433 = vsel %vm431, %v432, %v430
      %v434 = vclz %v433
      %v435 = vsub.s32 %v434, 2
      %vm436 = vcmp.gt.s32.totalorder 0, %v435
      %v437 = vsel %vm436, 0, %v435
      %v438 = vsub.s32 32, %v437
      %v439 = vshll.u32 %v430, %v437
      %v440 = vshrl.u32 %v422, %v438
      %v441 = vor.u32 %v439, %v440
      %v442 = vsub.s32 4294967266, %v437
      %v443 = vadd.s32 %v442, 127
      %v444 = vshll.u32 %v443, 23
      %v445 = vor.u32 4788187, %v444
      %v446 = vand.u32 2147483647, %v445
      %v448 = vcvt.s32.f32 %v441
      %v449 = vmul.f32 %v448, %v446
      %v450 = vxor.u32 %v449, 2147483648
      %v451 = vsel %vm368, %v450, %v449
      %v452 = vsub.s32 4, %v428
      %v453 = vsel %vm368, %v452, %v428
      %v454 = vsel %vm367, %v358, %v451
      %v455 = vsel %vm367, 0, %v453
      %v456 = vcosq.f32.pop %v454
      %v457 = vsinq.f32.pop %v454
      %vm458 = vweird.f32 %v358
      %v459 = vadd.s32 %v455, 3
      %v460 = vand.u32 %v459, 3
      %vm461 = vcmp.lt.s32.totalorder %v460, 2
      %vm462 = vcmp.eq.s32.totalorder %v460, 0
      %v463 = vxor.u32 %v457, 2147483648
      %v464 = vsel %vm462, %v456, %v463
      %vm465 = vcmp.eq.s32.totalorder %v460, 2
      %v466 = vxor.u32 %v456, 2147483648
      %v467 = vsel %vm465, %v466, %v457
      %v468 = vsel %vm461, %v464, %v467
      %v469 = vsel %vm458, nan, %v468
      %v470 = vand.u32 2147483647, %v359
      %vm471 = vcmp.le.f32.partialorder %v470, 0.7853982
      %vm472 = vcmp.lt.s32.totalorder %v359, 0
      %v473 = vand.u32 %v359, 2139095040
      %v474 = vshrl.u32 %v473, 23
      %v475 = vsub.s32 %v474, 127
      %v476 = vand.u32 2147483647, %v359
      %v477 = vand.u32 %v476, 8388607
      %v478 = vor.u32 %v477, 8388608
      %v479 = vsub.s32 0, %v478
      %v480 = vadd.s32 %v475, 1
      %vm481 = vcmp.gt.s32.totalorder %v480, 0
      %v482 = vsel %vm481, %v480, 0
      %v483 = vshrl.u32 %v482, 5
      %v484 = vand.u32 %v482, 31
      %v485 = vsub.s32 32, %v484
      %v486 = vshrl.u32 683565275, %v485
      %v487 = vshll.u32 683565275, %v484
      %v488 = vshrl.u32 2475754826, %v485
      %v489 = vor.u32 %v487, %v488
      %v490 = vshll.u32 2475754826, %v484
      %v491 = vshrl.u32 2131351028, %v485
      %v492 = vor.u32 %v490, %v491
      %v493 = vshll.u32 2131351028, %v484
      %v494 = vshrl.u32 2102212464, %v485
      %v495 = vor.u32 %v493, %v494
      %v496 = vshll.u32 2102212464, %v484
      %v497 = vshrl.u32 920167782, %v485
      %v498 = vor.u32 %v496, %v497
      %v499 = vshll.u32 920167782, %v484
      %v500 = vshrl.u32 1326507024, %v485
      %v501 = vor.u32 %v499, %v500
      %vm502 = vcmp.lt.s32.totalorder %v483, 1
      %vm503 = vcmp.lt.s32.totalorder %v483, 2
      %vm504 = vcmp.lt.s32.totalorder %v483, 3
      %vm505 = vcmp.lt.s32.totalorder %v483, 4
      %v506 = vsel %vm502, %v486, %v489
      %v507 = vsel %vm505, %v495, 2102212464
      %v508 = vsel %vm504, %v492, %v507
      %v509 = vsel %vm503, %v506, %v508
      %v510 = vsel %vm502, %v489, %v492
      %v511 = vsel %vm505, %v498, 920167782
      %v512 = vsel %vm504, %v495, %v511
      %v513 = vsel %vm503, %v510, %v512
      %v514 = vsel %vm502, %v492, %v495
      %v515 = vsel %vm505, %v501, 1326507024
      %v516 = vsel %vm504, %v498, %v515
      %v517 = vsel %vm503, %v514, %v516
      %v518 = vshll.u32 %v478, 8
      %v519 = vmul.u32.u64.compose %v518, %v517
      %v520 = vextract.low.u32 %v519
      %v521 = vextract.high.u32 %v519
      %v522 = vmul.u32.u64.compose %v518, %v513
      %v523 = vextract.low.u32 %v522
      %v524 = vextract.high.u32 %v522
      %v525 = vmul.u32 %v518, %v509
      %v526 = vadd.s32 %v521, %v523
      %vm527 = vc.u32 %v521, %v523
      %v528 = vadd.s32 %v524, 1
      %v529 = vsel %vm527, %v528, %v524
      %v530 = vadd.s32 %v525, %v529
      %v531 = vadd.s32 %v530, 536870912
      %v532 = vshrl.u32 %v531, 30
      %v533 = vshll.u32 %v532, 30
      %v534 = vsub.s32 %v530, %v533
      %vm535 = vcmp.lt.s32.totalorder %v534, 0
      %v536 = vsub.s32 0, %v534
      %v537 = vsel %vm535, %v536, %v534
      %v538 = vclz %v537
      %v539 = vsub.s32 %v538, 2
      %vm540 = vcmp.gt.s32.totalorder 0, %v539
      %v541 = vsel %vm540, 0, %v539
      %v542 = vsub.s32 32, %v541
      %v543 = vshll.u32 %v534, %v541
      %v544 = vshrl.u32 %v526, %v542
      %v545 = vor.u32 %v543, %v544
      %v546 = vsub.s32 4294967266, %v541
      %v547 = vadd.s32 %v546, 127
      %v548 = vshll.u32 %v547, 23
      %v549 = vor.u32 4788187, %v548
      %v550 = vand.u32 2147483647, %v549
      %v552 = vcvt.s32.f32 %v545
      %v553 = vmul.f32 %v552, %v550
      %v554 = vxor.u32 %v553, 2147483648
      %v555 = vsel %vm472, %v554, %v553
      %v556 = vsub.s32 4, %v532
      %v557 = vsel %vm472, %v556, %v532
      %v558 = vsel %vm471, %v359, %v555
      %v559 = vsel %vm471, 0, %v557
      %v560 = vcosq.f32.pop %v558
      %v561 = vsinq.f32.pop %v558
      %vm562 = vweird.f32 %v359
      %v563 = vadd.s32 %v559, 3
      %v564 = vand.u32 %v563, 3
      %vm565 = vcmp.lt.s32.totalorder %v564, 2
      %vm566 = vcmp.eq.s32.totalorder %v564, 0
      %v567 = vxor.u32 %v561, 2147483648
      %v568 = vsel %vm566, %v560, %v567
      %vm569 = vcmp.eq.s32.totalorder %v564, 2
      %v570 = vxor.u32 %v560, 2147483648
      %v571 = vsel %vm569, %v570, %v561
      %v572 = vsel %vm565, %v568, %v571
      %v573 = vsel %vm562, nan, %v572
      %v574 = vand.u32 2147483647, %v360
      %vm575 = vcmp.le.f32.partialorder %v574, 0.7853982
      %vm576 = vcmp.lt.s32.totalorder %v360, 0
      %v577 = vand.u32 %v360, 2139095040
      %v578 = vshrl.u32 %v577, 23
      %v579 = vsub.s32 %v578, 127
      %v580 = vand.u32 2147483647, %v360
      %v581 = vand.u32 %v580, 8388607
      %v582 = vor.u32 %v581, 8388608
      %v583 = vsub.s32 0, %v582
      %v584 = vadd.s32 %v579, 1
      %vm585 = vcmp.gt.s32.totalorder %v584, 0
      %v586 = vsel %vm585, %v584, 0
      %v587 = vshrl.u32 %v586, 5
      %v588 = vand.u32 %v586, 31
      %v589 = vsub.s32 32, %v588
      %v590 = vshrl.u32 683565275, %v589
      %v591 = vshll.u32 683565275, %v588
      %v592 = vshrl.u32 2475754826, %v589
      %v593 = vor.u32 %v591, %v592
      %v594 = vshll.u32 2475754826, %v588
      %v595 = vshrl.u32 2131351028, %v589
      %v596 = vor.u32 %v594, %v595
      %v597 = vshll.u32 2131351028, %v588
      %v598 = vshrl.u32 2102212464, %v589
      %v599 = vor.u32 %v597, %v598
      %v600 = vshll.u32 2102212464, %v588
      %v601 = vshrl.u32 920167782, %v589
      %v602 = vor.u32 %v600, %v601
      %v603 = vshll.u32 920167782, %v588
      %v604 = vshrl.u32 1326507024, %v589
      %v605 = vor.u32 %v603, %v604
      %vm606 = vcmp.lt.s32.totalorder %v587, 1
      %vm607 = vcmp.lt.s32.totalorder %v587, 2
      %vm608 = vcmp.lt.s32.totalorder %v587, 3
      %vm609 = vcmp.lt.s32.totalorder %v587, 4
      %v610 = vsel %vm606, %v590, %v593
      %v611 = vsel %vm609, %v599, 2102212464
      %v612 = vsel %vm608, %v596, %v611
      %v613 = vsel %vm607, %v610, %v612
      %v614 = vsel %vm606, %v593, %v596
      %v615 = vsel %vm609, %v602, 920167782
      %v616 = vsel %vm608, %v599, %v615
      %v617 = vsel %vm607, %v614, %v616
      %v618 = vsel %vm606, %v596, %v599
      %v619 = vsel %vm609, %v605, 1326507024
      %v620 = vsel %vm608, %v602, %v619
      %v621 = vsel %vm607, %v618, %v620
      %v622 = vshll.u32 %v582, 8
      %v623 = vmul.u32.u64.compose %v622, %v621
      %v624 = vextract.low.u32 %v623
      %v625 = vextract.high.u32 %v623
      %v626 = vmul.u32.u64.compose %v622, %v617
      %v627 = vextract.low.u32 %v626
      %v628 = vextract.high.u32 %v626
      %v629 = vmul.u32 %v622, %v613
      %v630 = vadd.s32 %v625, %v627
      %vm631 = vc.u32 %v625, %v627
      %v632 = vadd.s32 %v628, 1
      %v633 = vsel %vm631, %v632, %v628
      %v634 = vadd.s32 %v629, %v633
      %v635 = vadd.s32 %v634, 536870912
      %v636 = vshrl.u32 %v635, 30
      %v637 = vshll.u32 %v636, 30
      %v638 = vsub.s32 %v634, %v637
      %vm639 = vcmp.lt.s32.totalorder %v638, 0
      %v640 = vsub.s32 0, %v638
      %v641 = vsel %vm639, %v640, %v638
      %v642 = vclz %v641
      %v643 = vsub.s32 %v642, 2
      %vm644 = vcmp.gt.s32.totalorder 0, %v643
      %v645 = vsel %vm644, 0, %v643
      %v646 = vsub.s32 32, %v645
      %v647 = vshll.u32 %v638, %v645
      %v648 = vshrl.u32 %v630, %v646
      %v649 = vor.u32 %v647, %v648
      %v650 = vsub.s32 4294967266, %v645
      %v651 = vadd.s32 %v650, 127
      %v652 = vshll.u32 %v651, 23
      %v653 = vor.u32 4788187, %v652
      %v654 = vand.u32 2147483647, %v653
      %v656 = vcvt.s32.f32 %v649
      %v657 = vmul.f32 %v656, %v654
      %v658 = vxor.u32 %v657, 2147483648
      %v659 = vsel %vm576, %v658, %v657
      %v660 = vsub.s32 4, %v636
      %v661 = vsel %vm576, %v660, %v636
      %v662 = vsel %vm575, %v360, %v659
      %v663 = vsel %vm575, 0, %v661
      %v664 = vcosq.f32.pop %v662
      %v665 = vsinq.f32.pop %v662
      %vm666 = vweird.f32 %v360
      %v667 = vadd.s32 %v663, 3
      %v668 = vand.u32 %v667, 3
      %vm669 = vcmp.lt.s32.totalorder %v668, 2
      %vm670 = vcmp.eq.s32.totalorder %v668, 0
      %v671 = vxor.u32 %v665, 2147483648
      %v672 = vsel %vm670, %v664, %v671
      %vm673 = vcmp.eq.s32.totalorder %v668, 2
      %v674 = vxor.u32 %v664, 2147483648
      %v675 = vsel %vm673, %v674, %v665
      %v676 = vsel %vm669, %v672, %v675
      %v677 = vsel %vm666, nan, %v676
      %v678 = vand.u32 2147483647, %v361
      %vm679 = vcmp.le.f32.partialorder %v678, 0.7853982
      %vm680 = vcmp.lt.s32.totalorder %v361, 0
      %v681 = vand.u32 %v361, 2139095040
      %v682 = vshrl.u32 %v681, 23
      %v683 = vsub.s32 %v682, 127
      %v684 = vand.u32 2147483647, %v361
      %v685 = vand.u32 %v684, 8388607
      %v686 = vor.u32 %v685, 8388608
      %v687 = vsub.s32 0, %v686
      %v688 = vadd.s32 %v683, 1
      %vm689 = vcmp.gt.s32.totalorder %v688, 0
      %v690 = vsel %vm689, %v688, 0
      %v691 = vshrl.u32 %v690, 5
      %v692 = vand.u32 %v690, 31
      %v693 = vsub.s32 32, %v692
      %v694 = vshrl.u32 683565275, %v693
      %v695 = vshll.u32 683565275, %v692
      %v696 = vshrl.u32 2475754826, %v693
      %v697 = vor.u32 %v695, %v696
      %v698 = vshll.u32 2475754826, %v692
      %v699 = vshrl.u32 2131351028, %v693
      %v700 = vor.u32 %v698, %v699
      %v701 = vshll.u32 2131351028, %v692
      %v702 = vshrl.u32 2102212464, %v693
      %v703 = vor.u32 %v701, %v702
      %v704 = vshll.u32 2102212464, %v692
      %v705 = vshrl.u32 920167782, %v693
      %v706 = vor.u32 %v704, %v705
      %v707 = vshll.u32 920167782, %v692
      %v708 = vshrl.u32 1326507024, %v693
      %v709 = vor.u32 %v707, %v708
      %vm710 = vcmp.lt.s32.totalorder %v691, 1
      %vm711 = vcmp.lt.s32.totalorder %v691, 2
      %vm712 = vcmp.lt.s32.totalorder %v691, 3
      %vm713 = vcmp.lt.s32.totalorder %v691, 4
      %v714 = vsel %vm710, %v694, %v697
      %v715 = vsel %vm713, %v703, 2102212464
      %v716 = vsel %vm712, %v700, %v715
      %v717 = vsel %vm711, %v714, %v716
      %v718 = vsel %vm710, %v697, %v700
      %v719 = vsel %vm713, %v706, 920167782
      %v720 = vsel %vm712, %v703, %v719
      %v721 = vsel %vm711, %v718, %v720
      %v722 = vsel %vm710, %v700, %v703
      %v723 = vsel %vm713, %v709, 1326507024
      %v724 = vsel %vm712, %v706, %v723
      %v725 = vsel %vm711, %v722, %v724
      %v726 = vshll.u32 %v686, 8
      %v727 = vmul.u32.u64.compose %v726, %v725
      %v728 = vextract.low.u32 %v727
      %v729 = vextract.high.u32 %v727
      %v730 = vmul.u32.u64.compose %v726, %v721
      %v731 = vextract.low.u32 %v730
      %v732 = vextract.high.u32 %v730
      %v733 = vmul.u32 %v726, %v717
      %v734 = vadd.s32 %v729, %v731
      %vm735 = vc.u32 %v729, %v731
      %v736 = vadd.s32 %v732, 1
      %v737 = vsel %vm735, %v736, %v732
      %v738 = vadd.s32 %v733, %v737
      %v739 = vadd.s32 %v738, 536870912
      %v740 = vshrl.u32 %v739, 30
      %v741 = vshll.u32 %v740, 30
      %v742 = vsub.s32 %v738, %v741
      %vm743 = vcmp.lt.s32.totalorder %v742, 0
      %v744 = vsub.s32 0, %v742
      %v745 = vsel %vm743, %v744, %v742
      %v746 = vclz %v745
      %v747 = vsub.s32 %v746, 2
      %vm748 = vcmp.gt.s32.totalorder 0, %v747
      %v749 = vsel %vm748, 0, %v747
      %v750 = vsub.s32 32, %v749
      %v751 = vshll.u32 %v742, %v749
      %v752 = vshrl.u32 %v734, %v750
      %v753 = vor.u32 %v751, %v752
      %v754 = vsub.s32 4294967266, %v749
      %v755 = vadd.s32 %v754, 127
      %v756 = vshll.u32 %v755, 23
      %v757 = vor.u32 4788187, %v756
      %v758 = vand.u32 2147483647, %v757
      %v760 = vcvt.s32.f32 %v753
      %v761 = vmul.f32 %v760, %v758
      %v762 = vxor.u32 %v761, 2147483648
      %v763 = vsel %vm680, %v762, %v761
      %v764 = vsub.s32 4, %v740
      %v765 = vsel %vm680, %v764, %v740
      %v766 = vsel %vm679, %v361, %v763
      %v767 = vsel %vm679, 0, %v765
      %v768 = vcosq.f32.pop %v766
      %v769 = vsinq.f32.pop %v766
      %vm770 = vweird.f32 %v361
      %v771 = vadd.s32 %v767, 3
      %v772 = vand.u32 %v771, 3
      %vm773 = vcmp.lt.s32.totalorder %v772, 2
      %vm774 = vcmp.eq.s32.totalorder %v772, 0
      %v775 = vxor.u32 %v769, 2147483648
      %v776 = vsel %vm774, %v768, %v775
      %vm777 = vcmp.eq.s32.totalorder %v772, 2
      %v778 = vxor.u32 %v768, 2147483648
      %v779 = vsel %vm777, %v778, %v769
      %v780 = vsel %vm773, %v776, %v779
      %v781 = vsel %vm770, nan, %v780
      %v782 = vand.u32 2147483647, %v362
      %vm783 = vcmp.le.f32.partialorder %v782, 0.7853982
      %vm784 = vcmp.lt.s32.totalorder %v362, 0
      %v785 = vand.u32 %v362, 2139095040
      %v786 = vshrl.u32 %v785, 23
      %v787 = vsub.s32 %v786, 127
      %v788 = vand.u32 2147483647, %v362
      %v789 = vand.u32 %v788, 8388607
      %v790 = vor.u32 %v789, 8388608
      %v791 = vsub.s32 0, %v790
      %v792 = vadd.s32 %v787, 1
      %vm793 = vcmp.gt.s32.totalorder %v792, 0
      %v794 = vsel %vm793, %v792, 0
      %v795 = vshrl.u32 %v794, 5
      %v796 = vand.u32 %v794, 31
      %v797 = vsub.s32 32, %v796
      %v798 = vshrl.u32 683565275, %v797
      %v799 = vshll.u32 683565275, %v796
      %v800 = vshrl.u32 2475754826, %v797
      %v801 = vor.u32 %v799, %v800
      %v802 = vshll.u32 2475754826, %v796
      %v803 = vshrl.u32 2131351028, %v797
      %v804 = vor.u32 %v802, %v803
      %v805 = vshll.u32 2131351028, %v796
      %v806 = vshrl.u32 2102212464, %v797
      %v807 = vor.u32 %v805, %v806
      %v808 = vshll.u32 2102212464, %v796
      %v809 = vshrl.u32 920167782, %v797
      %v810 = vor.u32 %v808, %v809
      %v811 = vshll.u32 920167782, %v796
      %v812 = vshrl.u32 1326507024, %v797
      %v813 = vor.u32 %v811, %v812
      %vm814 = vcmp.lt.s32.totalorder %v795, 1
      %vm815 = vcmp.lt.s32.totalorder %v795, 2
      %vm816 = vcmp.lt.s32.totalorder %v795, 3
      %vm817 = vcmp.lt.s32.totalorder %v795, 4
      %v818 = vsel %vm814, %v798, %v801
      %v819 = vsel %vm817, %v807, 2102212464
      %v820 = vsel %vm816, %v804, %v819
      %v821 = vsel %vm815, %v818, %v820
      %v822 = vsel %vm814, %v801, %v804
      %v823 = vsel %vm817, %v810, 920167782
      %v824 = vsel %vm816, %v807, %v823
      %v825 = vsel %vm815, %v822, %v824
      %v826 = vsel %vm814, %v804, %v807
      %v827 = vsel %vm817, %v813, 1326507024
      %v828 = vsel %vm816, %v810, %v827
      %v829 = vsel %vm815, %v826, %v828
      %v830 = vshll.u32 %v790, 8
      %v831 = vmul.u32.u64.compose %v830, %v829
      %v832 = vextract.low.u32 %v831
      %v833 = vextract.high.u32 %v831
      %v834 = vmul.u32.u64.compose %v830, %v825
      %v835 = vextract.low.u32 %v834
      %v836 = vextract.high.u32 %v834
      %v837 = vmul.u32 %v830, %v821
      %v838 = vadd.s32 %v833, %v835
      %vm839 = vc.u32 %v833, %v835
      %v840 = vadd.s32 %v836, 1
      %v841 = vsel %vm839, %v840, %v836
      %v842 = vadd.s32 %v837, %v841
      %v843 = vadd.s32 %v842, 536870912
      %v844 = vshrl.u32 %v843, 30
      %v845 = vshll.u32 %v844, 30
      %v846 = vsub.s32 %v842, %v845
      %vm847 = vcmp.lt.s32.totalorder %v846, 0
      %v848 = vsub.s32 0, %v846
      %v849 = vsel %vm847, %v848, %v846
      %v850 = vclz %v849
      %v851 = vsub.s32 %v850, 2
      %vm852 = vcmp.gt.s32.totalorder 0, %v851
      %v853 = vsel %vm852, 0, %v851
      %v854 = vsub.s32 32, %v853
      %v855 = vshll.u32 %v846, %v853
      %v856 = vshrl.u32 %v838, %v854
      %v857 = vor.u32 %v855, %v856
      %v858 = vsub.s32 4294967266, %v853
      %v859 = vadd.s32 %v858, 127
      %v860 = vshll.u32 %v859, 23
      %v861 = vor.u32 4788187, %v860
      %v862 = vand.u32 2147483647, %v861
      %v864 = vcvt.s32.f32 %v857
      %v865 = vmul.f32 %v864, %v862
      %v866 = vxor.u32 %v865, 2147483648
      %v867 = vsel %vm784, %v866, %v865
      %v868 = vsub.s32 4, %v844
      %v869 = vsel %vm784, %v868, %v844
      %v870 = vsel %vm783, %v362, %v867
      %v871 = vsel %vm783, 0, %v869
      %v872 = vcosq.f32.pop %v870
      %v873 = vsinq.f32.pop %v870
      %vm874 = vweird.f32 %v362
      %v875 = vadd.s32 %v871, 3
      %v876 = vand.u32 %v875, 3
      %vm877 = vcmp.lt.s32.totalorder %v876, 2
      %vm878 = vcmp.eq.s32.totalorder %v876, 0
      %v879 = vxor.u32 %v873, 2147483648
      %v880 = vsel %vm878, %v872, %v879
      %vm881 = vcmp.eq.s32.totalorder %v876, 2
      %v882 = vxor.u32 %v872, 2147483648
      %v883 = vsel %vm881, %v882, %v873
      %v884 = vsel %vm877, %v880, %v883
      %v885 = vsel %vm874, nan, %v884
      %v886 = vand.u32 2147483647, %v363
      %vm887 = vcmp.le.f32.partialorder %v886, 0.7853982
      %vm888 = vcmp.lt.s32.totalorder %v363, 0
      %v889 = vand.u32 %v363, 2139095040
      %v890 = vshrl.u32 %v889, 23
      %v891 = vsub.s32 %v890, 127
      %v892 = vand.u32 2147483647, %v363
      %v893 = vand.u32 %v892, 8388607
      %v894 = vor.u32 %v893, 8388608
      %v895 = vsub.s32 0, %v894
      %v896 = vadd.s32 %v891, 1
      %vm897 = vcmp.gt.s32.totalorder %v896, 0
      %v898 = vsel %vm897, %v896, 0
      %v899 = vshrl.u32 %v898, 5
      %v900 = vand.u32 %v898, 31
      %v901 = vsub.s32 32, %v900
      %v902 = vshrl.u32 683565275, %v901
      %v903 = vshll.u32 683565275, %v900
      %v904 = vshrl.u32 2475754826, %v901
      %v905 = vor.u32 %v903, %v904
      %v906 = vshll.u32 2475754826, %v900
      %v907 = vshrl.u32 2131351028, %v901
      %v908 = vor.u32 %v906, %v907
      %v909 = vshll.u32 2131351028, %v900
      %v910 = vshrl.u32 2102212464, %v901
      %v911 = vor.u32 %v909, %v910
      %v912 = vshll.u32 2102212464, %v900
      %v913 = vshrl.u32 920167782, %v901
      %v914 = vor.u32 %v912, %v913
      %v915 = vshll.u32 920167782, %v900
      %v916 = vshrl.u32 1326507024, %v901
      %v917 = vor.u32 %v915, %v916
      %vm918 = vcmp.lt.s32.totalorder %v899, 1
      %vm919 = vcmp.lt.s32.totalorder %v899, 2
      %vm920 = vcmp.lt.s32.totalorder %v899, 3
      %vm921 = vcmp.lt.s32.totalorder %v899, 4
      %v922 = vsel %vm918, %v902, %v905
      %v923 = vsel %vm921, %v911, 2102212464
      %v924 = vsel %vm920, %v908, %v923
      %v925 = vsel %vm919, %v922, %v924
      %v926 = vsel %vm918, %v905, %v908
      %v927 = vsel %vm921, %v914, 920167782
      %v928 = vsel %vm920, %v911, %v927
      %v929 = vsel %vm919, %v926, %v928
      %v930 = vsel %vm918, %v908, %v911
      %v931 = vsel %vm921, %v917, 1326507024
      %v932 = vsel %vm920, %v914, %v931
      %v933 = vsel %vm919, %v930, %v932
      %v934 = vshll.u32 %v894, 8
      %v935 = vmul.u32.u64.compose %v934, %v933
      %v936 = vextract.low.u32 %v935
      %v937 = vextract.high.u32 %v935
      %v938 = vmul.u32.u64.compose %v934, %v929
      %v939 = vextract.low.u32 %v938
      %v940 = vextract.high.u32 %v938
      %v941 = vmul.u32 %v934, %v925
      %v942 = vadd.s32 %v937, %v939
      %vm943 = vc.u32 %v937, %v939
      %v944 = vadd.s32 %v940, 1
      %v945 = vsel %vm943, %v944, %v940
      %v946 = vadd.s32 %v941, %v945
      %v947 = vadd.s32 %v946, 536870912
      %v948 = vshrl.u32 %v947, 30
      %v949 = vshll.u32 %v948, 30
      %v950 = vsub.s32 %v946, %v949
      %vm951 = vcmp.lt.s32.totalorder %v950, 0
      %v952 = vsub.s32 0, %v950
      %v953 = vsel %vm951, %v952, %v950
      %v954 = vclz %v953
      %v955 = vsub.s32 %v954, 2
      %vm956 = vcmp.gt.s32.totalorder 0, %v955
      %v957 = vsel %vm956, 0, %v955
      %v958 = vsub.s32 32, %v957
      %v959 = vshll.u32 %v950, %v957
      %v960 = vshrl.u32 %v942, %v958
      %v961 = vor.u32 %v959, %v960
      %v962 = vsub.s32 4294967266, %v957
      %v963 = vadd.s32 %v962, 127
      %v964 = vshll.u32 %v963, 23
      %v965 = vor.u32 4788187, %v964
      %v966 = vand.u32 2147483647, %v965
      %v968 = vcvt.s32.f32 %v961
      %v969 = vmul.f32 %v968, %v966
      %v970 = vxor.u32 %v969, 2147483648
      %v971 = vsel %vm888, %v970, %v969
      %v972 = vsub.s32 4, %v948
      %v973 = vsel %vm888, %v972, %v948
      %v974 = vsel %vm887, %v363, %v971
      %v975 = vsel %vm887, 0, %v973
      %v976 = vcosq.f32.pop %v974
      %v977 = vsinq.f32.pop %v974
      %vm978 = vweird.f32 %v363
      %v979 = vadd.s32 %v975, 3
      %v980 = vand.u32 %v979, 3
      %vm981 = vcmp.lt.s32.totalorder %v980, 2
      %vm982 = vcmp.eq.s32.totalorder %v980, 0
      %v983 = vxor.u32 %v977, 2147483648
      %v984 = vsel %vm982, %v976, %v983
      %vm985 = vcmp.eq.s32.totalorder %v980, 2
      %v986 = vxor.u32 %v976, 2147483648
      %v987 = vsel %vm985, %v986, %v977
      %v988 = vsel %vm981, %v984, %v987
      %v989 = vsel %vm978, nan, %v988
      %v990 = vand.u32 2147483647, %v364
      %vm991 = vcmp.le.f32.partialorder %v990, 0.7853982
      %vm992 = vcmp.lt.s32.totalorder %v364, 0
      %v993 = vand.u32 %v364, 2139095040
      %v994 = vshrl.u32 %v993, 23
      %v995 = vsub.s32 %v994, 127
      %v996 = vand.u32 2147483647, %v364
      %v997 = vand.u32 %v996, 8388607
      %v998 = vor.u32 %v997, 8388608
      %v999 = vsub.s32 0, %v998
      %v1000 = vadd.s32 %v995, 1
      %vm1001 = vcmp.gt.s32.totalorder %v1000, 0
      %v1002 = vsel %vm1001, %v1000, 0
      %v1003 = vshrl.u32 %v1002, 5
      %v1004 = vand.u32 %v1002, 31
      %v1005 = vsub.s32 32, %v1004
      %v1006 = vshrl.u32 683565275, %v1005
      %v1007 = vshll.u32 683565275, %v1004
      %v1008 = vshrl.u32 2475754826, %v1005
      %v1009 = vor.u32 %v1007, %v1008
      %v1010 = vshll.u32 2475754826, %v1004
      %v1011 = vshrl.u32 2131351028, %v1005
      %v1012 = vor.u32 %v1010, %v1011
      %v1013 = vshll.u32 2131351028, %v1004
      %v1014 = vshrl.u32 2102212464, %v1005
      %v1015 = vor.u32 %v1013, %v1014
      %v1016 = vshll.u32 2102212464, %v1004
      %v1017 = vshrl.u32 920167782, %v1005
      %v1018 = vor.u32 %v1016, %v1017
      %v1019 = vshll.u32 920167782, %v1004
      %v1020 = vshrl.u32 1326507024, %v1005
      %v1021 = vor.u32 %v1019, %v1020
      %vm1022 = vcmp.lt.s32.totalorder %v1003, 1
      %vm1023 = vcmp.lt.s32.totalorder %v1003, 2
      %vm1024 = vcmp.lt.s32.totalorder %v1003, 3
      %vm1025 = vcmp.lt.s32.totalorder %v1003, 4
      %v1026 = vsel %vm1022, %v1006, %v1009
      %v1027 = vsel %vm1025, %v1015, 2102212464
      %v1028 = vsel %vm1024, %v1012, %v1027
      %v1029 = vsel %vm1023, %v1026, %v1028
      %v1030 = vsel %vm1022, %v1009, %v1012
      %v1031 = vsel %vm1025, %v1018, 920167782
      %v1032 = vsel %vm1024, %v1015, %v1031
      %v1033 = vsel %vm1023, %v1030, %v1032
      %v1034 = vsel %vm1022, %v1012, %v1015
      %v1035 = vsel %vm1025, %v1021, 1326507024
      %v1036 = vsel %vm1024, %v1018, %v1035
      %v1037 = vsel %vm1023, %v1034, %v1036
      %v1038 = vshll.u32 %v998, 8
      %v1039 = vmul.u32.u64.compose %v1038, %v1037
      %v1040 = vextract.low.u32 %v1039
      %v1041 = vextract.high.u32 %v1039
      %v1042 = vmul.u32.u64.compose %v1038, %v1033
      %v1043 = vextract.low.u32 %v1042
      %v1044 = vextract.high.u32 %v1042
      %v1045 = vmul.u32 %v1038, %v1029
      %v1046 = vadd.s32 %v1041, %v1043
      %vm1047 = vc.u32 %v1041, %v1043
      %v1048 = vadd.s32 %v1044, 1
      %v1049 = vsel %vm1047, %v1048, %v1044
      %v1050 = vadd.s32 %v1045, %v1049
      %v1051 = vadd.s32 %v1050, 536870912
      %v1052 = vshrl.u32 %v1051, 30
      %v1053 = vshll.u32 %v1052, 30
      %v1054 = vsub.s32 %v1050, %v1053
      %vm1055 = vcmp.lt.s32.totalorder %v1054, 0
      %v1056 = vsub.s32 0, %v1054
      %v1057 = vsel %vm1055, %v1056, %v1054
      %v1058 = vclz %v1057
      %v1059 = vsub.s32 %v1058, 2
      %vm1060 = vcmp.gt.s32.totalorder 0, %v1059
      %v1061 = vsel %vm1060, 0, %v1059
      %v1062 = vsub.s32 32, %v1061
      %v1063 = vshll.u32 %v1054, %v1061
      %v1064 = vshrl.u32 %v1046, %v1062
      %v1065 = vor.u32 %v1063, %v1064
      %v1066 = vsub.s32 4294967266, %v1061
      %v1067 = vadd.s32 %v1066, 127
      %v1068 = vshll.u32 %v1067, 23
      %v1069 = vor.u32 4788187, %v1068
      %v1070 = vand.u32 2147483647, %v1069
      %v1072 = vcvt.s32.f32 %v1065
      %v1073 = vmul.f32 %v1072, %v1070
      %v1074 = vxor.u32 %v1073, 2147483648
      %v1075 = vsel %vm992, %v1074, %v1073
      %v1076 = vsub.s32 4, %v1052
      %v1077 = vsel %vm992, %v1076, %v1052
      %v1078 = vsel %vm991, %v364, %v1075
      %v1079 = vsel %vm991, 0, %v1077
      %v1080 = vcosq.f32.pop %v1078
      %v1081 = vsinq.f32.pop %v1078
      %vm1082 = vweird.f32 %v364
      %v1083 = vadd.s32 %v1079, 3
      %v1084 = vand.u32 %v1083, 3
      %vm1085 = vcmp.lt.s32.totalorder %v1084, 2
      %vm1086 = vcmp.eq.s32.totalorder %v1084, 0
      %v1087 = vxor.u32 %v1081, 2147483648
      %v1088 = vsel %vm1086, %v1080, %v1087
      %vm1089 = vcmp.eq.s32.totalorder %v1084, 2
      %v1090 = vxor.u32 %v1080, 2147483648
      %v1091 = vsel %vm1089, %v1090, %v1081
      %v1092 = vsel %vm1085, %v1088, %v1091
      %v1093 = vsel %vm1082, nan, %v1092
      %v1094 = vand.u32 2147483647, %v365
      %vm1095 = vcmp.le.f32.partialorder %v1094, 0.7853982
      %vm1096 = vcmp.lt.s32.totalorder %v365, 0
      %v1097 = vand.u32 %v365, 2139095040
      %v1098 = vshrl.u32 %v1097, 23
      %v1099 = vsub.s32 %v1098, 127
      %v1100 = vand.u32 2147483647, %v365
      %v1101 = vand.u32 %v1100, 8388607
      %v1102 = vor.u32 %v1101, 8388608
      %v1103 = vsub.s32 0, %v1102
      %v1104 = vadd.s32 %v1099, 1
      %vm1105 = vcmp.gt.s32.totalorder %v1104, 0
      %v1106 = vsel %vm1105, %v1104, 0
      %v1107 = vshrl.u32 %v1106, 5
      %v1108 = vand.u32 %v1106, 31
      %v1109 = vsub.s32 32, %v1108
      %v1110 = vshrl.u32 683565275, %v1109
      %v1111 = vshll.u32 683565275, %v1108
      %v1112 = vshrl.u32 2475754826, %v1109
      %v1113 = vor.u32 %v1111, %v1112
      %v1114 = vshll.u32 2475754826, %v1108
      %v1115 = vshrl.u32 2131351028, %v1109
      %v1116 = vor.u32 %v1114, %v1115
      %v1117 = vshll.u32 2131351028, %v1108
      %v1118 = vshrl.u32 2102212464, %v1109
      %v1119 = vor.u32 %v1117, %v1118
      %v1120 = vshll.u32 2102212464, %v1108
      %v1121 = vshrl.u32 920167782, %v1109
      %v1122 = vor.u32 %v1120, %v1121
      %v1123 = vshll.u32 920167782, %v1108
      %v1124 = vshrl.u32 1326507024, %v1109
      %v1125 = vor.u32 %v1123, %v1124
      %vm1126 = vcmp.lt.s32.totalorder %v1107, 1
      %vm1127 = vcmp.lt.s32.totalorder %v1107, 2
      %vm1128 = vcmp.lt.s32.totalorder %v1107, 3
      %vm1129 = vcmp.lt.s32.totalorder %v1107, 4
      %v1130 = vsel %vm1126, %v1110, %v1113
      %v1131 = vsel %vm1129, %v1119, 2102212464
      %v1132 = vsel %vm1128, %v1116, %v1131
      %v1133 = vsel %vm1127, %v1130, %v1132
      %v1134 = vsel %vm1126, %v1113, %v1116
      %v1135 = vsel %vm1129, %v1122, 920167782
      %v1136 = vsel %vm1128, %v1119, %v1135
      %v1137 = vsel %vm1127, %v1134, %v1136
      %v1138 = vsel %vm1126, %v1116, %v1119
      %v1139 = vsel %vm1129, %v1125, 1326507024
      %v1140 = vsel %vm1128, %v1122, %v1139
      %v1141 = vsel %vm1127, %v1138, %v1140
      %v1142 = vshll.u32 %v1102, 8
      %v1143 = vmul.u32.u64.compose %v1142, %v1141
      %v1144 = vextract.low.u32 %v1143
      %v1145 = vextract.high.u32 %v1143
      %v1146 = vmul.u32.u64.compose %v1142, %v1137
      %v1147 = vextract.low.u32 %v1146
      %v1148 = vextract.high.u32 %v1146
      %v1149 = vmul.u32 %v1142, %v1133
      %v1150 = vadd.s32 %v1145, %v1147
      %vm1151 = vc.u32 %v1145, %v1147
      %v1152 = vadd.s32 %v1148, 1
      %v1153 = vsel %vm1151, %v1152, %v1148
      %v1154 = vadd.s32 %v1149, %v1153
      %v1155 = vadd.s32 %v1154, 536870912
      %v1156 = vshrl.u32 %v1155, 30
      %v1157 = vshll.u32 %v1156, 30
      %v1158 = vsub.s32 %v1154, %v1157
      %vm1159 = vcmp.lt.s32.totalorder %v1158, 0
      %v1160 = vsub.s32 0, %v1158
      %v1161 = vsel %vm1159, %v1160, %v1158
      %v1162 = vclz %v1161
      %v1163 = vsub.s32 %v1162, 2
      %vm1164 = vcmp.gt.s32.totalorder 0, %v1163
      %v1165 = vsel %vm1164, 0, %v1163
      %v1166 = vsub.s32 32, %v1165
      %v1167 = vshll.u32 %v1158, %v1165
      %v1168 = vshrl.u32 %v1150, %v1166
      %v1169 = vor.u32 %v1167, %v1168
      %v1170 = vsub.s32 4294967266, %v1165
      %v1171 = vadd.s32 %v1170, 127
      %v1172 = vshll.u32 %v1171, 23
      %v1173 = vor.u32 4788187, %v1172
      %v1174 = vand.u32 2147483647, %v1173
      %v1176 = vcvt.s32.f32 %v1169
      %v1177 = vmul.f32 %v1176, %v1174
      %v1178 = vxor.u32 %v1177, 2147483648
      %v1179 = vsel %vm1096, %v1178, %v1177
      %v1180 = vsub.s32 4, %v1156
      %v1181 = vsel %vm1096, %v1180, %v1156
      %v1182 = vsel %vm1095, %v365, %v1179
      %v1183 = vsel %vm1095, 0, %v1181
      %v1184 = vcosq.f32.pop %v1182
      %v1185 = vsinq.f32.pop %v1182
      %vm1186 = vweird.f32 %v365
      %v1187 = vadd.s32 %v1183, 3
      %v1188 = vand.u32 %v1187, 3
      %vm1189 = vcmp.lt.s32.totalorder %v1188, 2
      %vm1190 = vcmp.eq.s32.totalorder %v1188, 0
      %v1191 = vxor.u32 %v1185, 2147483648
      %v1192 = vsel %vm1190, %v1184, %v1191
      %vm1193 = vcmp.eq.s32.totalorder %v1188, 2
      %v1194 = vxor.u32 %v1184, 2147483648
      %v1195 = vsel %vm1193, %v1194, %v1185
      %v1196 = vsel %vm1189, %v1192, %v1195
      %v1197 = vsel %vm1186, nan, %v1196
      %1198 = vst [vmem:[%s181] sm:$0xff] %v469
      %1199 = vst [vmem:[%s181 + $0x8] sm:$0xff] %v573
      %1200 = vst [vmem:[%s181 + $0x10] sm:$0xff] %v677
      %1201 = vst [vmem:[%s181 + $0x18] sm:$0xff] %v781
      %1202 = vst [vmem:[%s181 + $0x20] sm:$0xff] %v885
      %1203 = vst [vmem:[%s181 + $0x28] sm:$0xff] %v989
      %1204 = vst [vmem:[%s181 + $0x30] sm:$0xff] %v1093
      %1205 = vst [vmem:[%s181 + $0x38] sm:$0xff] %v1197
      %v1206 = vand.u32 2147483647, %v358
      %vm1207 = vcmp.le.f32.partialorder %v1206, 0.7853982
      %vm1208 = vcmp.lt.s32.totalorder %v358, 0
      %v1209 = vand.u32 %v358, 2139095040
      %v1210 = vshrl.u32 %v1209, 23
      %v1211 = vsub.s32 %v1210, 127
      %v1212 = vand.u32 2147483647, %v358
      %v1213 = vand.u32 %v1212, 8388607
      %v1214 = vor.u32 %v1213, 8388608
      %v1215 = vsub.s32 0, %v1214
      %v1216 = vadd.s32 %v1211, 1
      %vm1217 = vcmp.gt.s32.totalorder %v1216, 0
      %v1218 = vsel %vm1217, %v1216, 0
      %v1219 = vshrl.u32 %v1218, 5
      %v1220 = vand.u32 %v1218, 31
      %v1221 = vsub.s32 32, %v1220
      %v1222 = vshrl.u32 683565275, %v1221
      %v1223 = vshll.u32 683565275, %v1220
      %v1224 = vshrl.u32 2475754826, %v1221
      %v1225 = vor.u32 %v1223, %v1224
      %v1226 = vshll.u32 2475754826, %v1220
      %v1227 = vshrl.u32 2131351028, %v1221
      %v1228 = vor.u32 %v1226, %v1227
      %v1229 = vshll.u32 2131351028, %v1220
      %v1230 = vshrl.u32 2102212464, %v1221
      %v1231 = vor.u32 %v1229, %v1230
      %v1232 = vshll.u32 2102212464, %v1220
      %v1233 = vshrl.u32 920167782, %v1221
      %v1234 = vor.u32 %v1232, %v1233
      %v1235 = vshll.u32 920167782, %v1220
      %v1236 = vshrl.u32 1326507024, %v1221
      %v1237 = vor.u32 %v1235, %v1236
      %vm1238 = vcmp.lt.s32.totalorder %v1219, 1
      %vm1239 = vcmp.lt.s32.totalorder %v1219, 2
      %vm1240 = vcmp.lt.s32.totalorder %v1219, 3
      %vm1241 = vcmp.lt.s32.totalorder %v1219, 4
      %v1242 = vsel %vm1238, %v1222, %v1225
      %v1243 = vsel %vm1241, %v1231, 2102212464
      %v1244 = vsel %vm1240, %v1228, %v1243
      %v1245 = vsel %vm1239, %v1242, %v1244
      %v1246 = vsel %vm1238, %v1225, %v1228
      %v1247 = vsel %vm1241, %v1234, 920167782
      %v1248 = vsel %vm1240, %v1231, %v1247
      %v1249 = vsel %vm1239, %v1246, %v1248
      %v1250 = vsel %vm1238, %v1228, %v1231
      %v1251 = vsel %vm1241, %v1237, 1326507024
      %v1252 = vsel %vm1240, %v1234, %v1251
      %v1253 = vsel %vm1239, %v1250, %v1252
      %v1254 = vshll.u32 %v1214, 8
      %v1255 = vmul.u32.u64.compose %v1254, %v1253
      %v1256 = vextract.low.u32 %v1255
      %v1257 = vextract.high.u32 %v1255
      %v1258 = vmul.u32.u64.compose %v1254, %v1249
      %v1259 = vextract.low.u32 %v1258
      %v1260 = vextract.high.u32 %v1258
      %v1261 = vmul.u32 %v1254, %v1245
      %v1262 = vadd.s32 %v1257, %v1259
      %vm1263 = vc.u32 %v1257, %v1259
      %v1264 = vadd.s32 %v1260, 1
      %v1265 = vsel %vm1263, %v1264, %v1260
      %v1266 = vadd.s32 %v1261, %v1265
      %v1267 = vadd.s32 %v1266, 536870912
      %v1268 = vshrl.u32 %v1267, 30
      %v1269 = vshll.u32 %v1268, 30
      %v1270 = vsub.s32 %v1266, %v1269
      %vm1271 = vcmp.lt.s32.totalorder %v1270, 0
      %v1272 = vsub.s32 0, %v1270
      %v1273 = vsel %vm1271, %v1272, %v1270
      %v1274 = vclz %v1273
      %v1275 = vsub.s32 %v1274, 2
      %vm1276 = vcmp.gt.s32.totalorder 0, %v1275
      %v1277 = vsel %vm1276, 0, %v1275
      %v1278 = vsub.s32 32, %v1277
      %v1279 = vshll.u32 %v1270, %v1277
      %v1280 = vshrl.u32 %v1262, %v1278
      %v1281 = vor.u32 %v1279, %v1280
      %v1282 = vsub.s32 4294967266, %v1277
      %v1283 = vadd.s32 %v1282, 127
      %v1284 = vshll.u32 %v1283, 23
      %v1285 = vor.u32 4788187, %v1284
      %v1286 = vand.u32 2147483647, %v1285
      %v1288 = vcvt.s32.f32 %v1281
      %v1289 = vmul.f32 %v1288, %v1286
      %v1290 = vxor.u32 %v1289, 2147483648
      %v1291 = vsel %vm1208, %v1290, %v1289
      %v1292 = vsub.s32 4, %v1268
      %v1293 = vsel %vm1208, %v1292, %v1268
      %v1294 = vsel %vm1207, %v358, %v1291
      %v1295 = vsel %vm1207, 0, %v1293
      %v1296 = vcosq.f32.pop %v1294
      %v1297 = vsinq.f32.pop %v1294
      %vm1298 = vweird.f32 %v358
      %v1299 = vand.u32 %v1295, 3
      %vm1300 = vcmp.lt.s32.totalorder %v1299, 2
      %vm1301 = vcmp.eq.s32.totalorder %v1299, 0
      %v1302 = vxor.u32 %v1297, 2147483648
      %v1303 = vsel %vm1301, %v1296, %v1302
      %vm1304 = vcmp.eq.s32.totalorder %v1299, 2
      %v1305 = vxor.u32 %v1296, 2147483648
      %v1306 = vsel %vm1304, %v1305, %v1297
      %v1307 = vsel %vm1300, %v1303, %v1306
      %v1308 = vsel %vm1298, nan, %v1307
      %v1309 = vand.u32 2147483647, %v359
      %vm1310 = vcmp.le.f32.partialorder %v1309, 0.7853982
      %vm1311 = vcmp.lt.s32.totalorder %v359, 0
      %v1312 = vand.u32 %v359, 2139095040
      %v1313 = vshrl.u32 %v1312, 23
      %v1314 = vsub.s32 %v1313, 127
      %v1315 = vand.u32 2147483647, %v359
      %v1316 = vand.u32 %v1315, 8388607
      %v1317 = vor.u32 %v1316, 8388608
      %v1318 = vsub.s32 0, %v1317
      %v1319 = vadd.s32 %v1314, 1
      %vm1320 = vcmp.gt.s32.totalorder %v1319, 0
      %v1321 = vsel %vm1320, %v1319, 0
      %v1322 = vshrl.u32 %v1321, 5
      %v1323 = vand.u32 %v1321, 31
      %v1324 = vsub.s32 32, %v1323
      %v1325 = vshrl.u32 683565275, %v1324
      %v1326 = vshll.u32 683565275, %v1323
      %v1327 = vshrl.u32 2475754826, %v1324
      %v1328 = vor.u32 %v1326, %v1327
      %v1329 = vshll.u32 2475754826, %v1323
      %v1330 = vshrl.u32 2131351028, %v1324
      %v1331 = vor.u32 %v1329, %v1330
      %v1332 = vshll.u32 2131351028, %v1323
      %v1333 = vshrl.u32 2102212464, %v1324
      %v1334 = vor.u32 %v1332, %v1333
      %v1335 = vshll.u32 2102212464, %v1323
      %v1336 = vshrl.u32 920167782, %v1324
      %v1337 = vor.u32 %v1335, %v1336
      %v1338 = vshll.u32 920167782, %v1323
      %v1339 = vshrl.u32 1326507024, %v1324
      %v1340 = vor.u32 %v1338, %v1339
      %vm1341 = vcmp.lt.s32.totalorder %v1322, 1
      %vm1342 = vcmp.lt.s32.totalorder %v1322, 2
      %vm1343 = vcmp.lt.s32.totalorder %v1322, 3
      %vm1344 = vcmp.lt.s32.totalorder %v1322, 4
      %v1345 = vsel %vm1341, %v1325, %v1328
      %v1346 = vsel %vm1344, %v1334, 2102212464
      %v1347 = vsel %vm1343, %v1331, %v1346
      %v1348 = vsel %vm1342, %v1345, %v1347
      %v1349 = vsel %vm1341, %v1328, %v1331
      %v1350 = vsel %vm1344, %v1337, 920167782
      %v1351 = vsel %vm1343, %v1334, %v1350
      %v1352 = vsel %vm1342, %v1349, %v1351
      %v1353 = vsel %vm1341, %v1331, %v1334
      %v1354 = vsel %vm1344, %v1340, 1326507024
      %v1355 = vsel %vm1343, %v1337, %v1354
      %v1356 = vsel %vm1342, %v1353, %v1355
      %v1357 = vshll.u32 %v1317, 8
      %v1358 = vmul.u32.u64.compose %v1357, %v1356
      %v1359 = vextract.low.u32 %v1358
      %v1360 = vextract.high.u32 %v1358
      %v1361 = vmul.u32.u64.compose %v1357, %v1352
      %v1362 = vextract.low.u32 %v1361
      %v1363 = vextract.high.u32 %v1361
      %v1364 = vmul.u32 %v1357, %v1348
      %v1365 = vadd.s32 %v1360, %v1362
      %vm1366 = vc.u32 %v1360, %v1362
      %v1367 = vadd.s32 %v1363, 1
      %v1368 = vsel %vm1366, %v1367, %v1363
      %v1369 = vadd.s32 %v1364, %v1368
      %v1370 = vadd.s32 %v1369, 536870912
      %v1371 = vshrl.u32 %v1370, 30
      %v1372 = vshll.u32 %v1371, 30
      %v1373 = vsub.s32 %v1369, %v1372
      %vm1374 = vcmp.lt.s32.totalorder %v1373, 0
      %v1375 = vsub.s32 0, %v1373
      %v1376 = vsel %vm1374, %v1375, %v1373
      %v1377 = vclz %v1376
      %v1378 = vsub.s32 %v1377, 2
      %vm1379 = vcmp.gt.s32.totalorder 0, %v1378
      %v1380 = vsel %vm1379, 0, %v1378
      %v1381 = vsub.s32 32, %v1380
      %v1382 = vshll.u32 %v1373, %v1380
      %v1383 = vshrl.u32 %v1365, %v1381
      %v1384 = vor.u32 %v1382, %v1383
      %v1385 = vsub.s32 4294967266, %v1380
      %v1386 = vadd.s32 %v1385, 127
      %v1387 = vshll.u32 %v1386, 23
      %v1388 = vor.u32 4788187, %v1387
      %v1389 = vand.u32 2147483647, %v1388
      %v1391 = vcvt.s32.f32 %v1384
      %v1392 = vmul.f32 %v1391, %v1389
      %v1393 = vxor.u32 %v1392, 2147483648
      %v1394 = vsel %vm1311, %v1393, %v1392
      %v1395 = vsub.s32 4, %v1371
      %v1396 = vsel %vm1311, %v1395, %v1371
      %v1397 = vsel %vm1310, %v359, %v1394
      %v1398 = vsel %vm1310, 0, %v1396
      %v1399 = vcosq.f32.pop %v1397
      %v1400 = vsinq.f32.pop %v1397
      %vm1401 = vweird.f32 %v359
      %v1402 = vand.u32 %v1398, 3
      %vm1403 = vcmp.lt.s32.totalorder %v1402, 2
      %vm1404 = vcmp.eq.s32.totalorder %v1402, 0
      %v1405 = vxor.u32 %v1400, 2147483648
      %v1406 = vsel %vm1404, %v1399, %v1405
      %vm1407 = vcmp.eq.s32.totalorder %v1402, 2
      %v1408 = vxor.u32 %v1399, 2147483648
      %v1409 = vsel %vm1407, %v1408, %v1400
      %v1410 = vsel %vm1403, %v1406, %v1409
      %v1411 = vsel %vm1401, nan, %v1410
      %v1412 = vand.u32 2147483647, %v360
      %vm1413 = vcmp.le.f32.partialorder %v1412, 0.7853982
      %vm1414 = vcmp.lt.s32.totalorder %v360, 0
      %v1415 = vand.u32 %v360, 2139095040
      %v1416 = vshrl.u32 %v1415, 23
      %v1417 = vsub.s32 %v1416, 127
      %v1418 = vand.u32 2147483647, %v360
      %v1419 = vand.u32 %v1418, 8388607
      %v1420 = vor.u32 %v1419, 8388608
      %v1421 = vsub.s32 0, %v1420
      %v1422 = vadd.s32 %v1417, 1
      %vm1423 = vcmp.gt.s32.totalorder %v1422, 0
      %v1424 = vsel %vm1423, %v1422, 0
      %v1425 = vshrl.u32 %v1424, 5
      %v1426 = vand.u32 %v1424, 31
      %v1427 = vsub.s32 32, %v1426
      %v1428 = vshrl.u32 683565275, %v1427
      %v1429 = vshll.u32 683565275, %v1426
      %v1430 = vshrl.u32 2475754826, %v1427
      %v1431 = vor.u32 %v1429, %v1430
      %v1432 = vshll.u32 2475754826, %v1426
      %v1433 = vshrl.u32 2131351028, %v1427
      %v1434 = vor.u32 %v1432, %v1433
      %v1435 = vshll.u32 2131351028, %v1426
      %v1436 = vshrl.u32 2102212464, %v1427
      %v1437 = vor.u32 %v1435, %v1436
      %v1438 = vshll.u32 2102212464, %v1426
      %v1439 = vshrl.u32 920167782, %v1427
      %v1440 = vor.u32 %v1438, %v1439
      %v1441 = vshll.u32 920167782, %v1426
      %v1442 = vshrl.u32 1326507024, %v1427
      %v1443 = vor.u32 %v1441, %v1442
      %vm1444 = vcmp.lt.s32.totalorder %v1425, 1
      %vm1445 = vcmp.lt.s32.totalorder %v1425, 2
      %vm1446 = vcmp.lt.s32.totalorder %v1425, 3
      %vm1447 = vcmp.lt.s32.totalorder %v1425, 4
      %v1448 = vsel %vm1444, %v1428, %v1431
      %v1449 = vsel %vm1447, %v1437, 2102212464
      %v1450 = vsel %vm1446, %v1434, %v1449
      %v1451 = vsel %vm1445, %v1448, %v1450
      %v1452 = vsel %vm1444, %v1431, %v1434
      %v1453 = vsel %vm1447, %v1440, 920167782
      %v1454 = vsel %vm1446, %v1437, %v1453
      %v1455 = vsel %vm1445, %v1452, %v1454
      %v1456 = vsel %vm1444, %v1434, %v1437
      %v1457 = vsel %vm1447, %v1443, 1326507024
      %v1458 = vsel %vm1446, %v1440, %v1457
      %v1459 = vsel %vm1445, %v1456, %v1458
      %v1460 = vshll.u32 %v1420, 8
      %v1461 = vmul.u32.u64.compose %v1460, %v1459
      %v1462 = vextract.low.u32 %v1461
      %v1463 = vextract.high.u32 %v1461
      %v1464 = vmul.u32.u64.compose %v1460, %v1455
      %v1465 = vextract.low.u32 %v1464
      %v1466 = vextract.high.u32 %v1464
      %v1467 = vmul.u32 %v1460, %v1451
      %v1468 = vadd.s32 %v1463, %v1465
      %vm1469 = vc.u32 %v1463, %v1465
      %v1470 = vadd.s32 %v1466, 1
      %v1471 = vsel %vm1469, %v1470, %v1466
      %v1472 = vadd.s32 %v1467, %v1471
      %v1473 = vadd.s32 %v1472, 536870912
      %v1474 = vshrl.u32 %v1473, 30
      %v1475 = vshll.u32 %v1474, 30
      %v1476 = vsub.s32 %v1472, %v1475
      %vm1477 = vcmp.lt.s32.totalorder %v1476, 0
      %v1478 = vsub.s32 0, %v1476
      %v1479 = vsel %vm1477, %v1478, %v1476
      %v1480 = vclz %v1479
      %v1481 = vsub.s32 %v1480, 2
      %vm1482 = vcmp.gt.s32.totalorder 0, %v1481
      %v1483 = vsel %vm1482, 0, %v1481
      %v1484 = vsub.s32 32, %v1483
      %v1485 = vshll.u32 %v1476, %v1483
      %v1486 = vshrl.u32 %v1468, %v1484
      %v1487 = vor.u32 %v1485, %v1486
      %v1488 = vsub.s32 4294967266, %v1483
      %v1489 = vadd.s32 %v1488, 127
      %v1490 = vshll.u32 %v1489, 23
      %v1491 = vor.u32 4788187, %v1490
      %v1492 = vand.u32 2147483647, %v1491
      %v1494 = vcvt.s32.f32 %v1487
      %v1495 = vmul.f32 %v1494, %v1492
      %v1496 = vxor.u32 %v1495, 2147483648
      %v1497 = vsel %vm1414, %v1496, %v1495
      %v1498 = vsub.s32 4, %v1474
      %v1499 = vsel %vm1414, %v1498, %v1474
      %v1500 = vsel %vm1413, %v360, %v1497
      %v1501 = vsel %vm1413, 0, %v1499
      %v1502 = vcosq.f32.pop %v1500
      %v1503 = vsinq.f32.pop %v1500
      %vm1504 = vweird.f32 %v360
      %v1505 = vand.u32 %v1501, 3
      %vm1506 = vcmp.lt.s32.totalorder %v1505, 2
      %vm1507 = vcmp.eq.s32.totalorder %v1505, 0
      %v1508 = vxor.u32 %v1503, 2147483648
      %v1509 = vsel %vm1507, %v1502, %v1508
      %vm1510 = vcmp.eq.s32.totalorder %v1505, 2
      %v1511 = vxor.u32 %v1502, 2147483648
      %v1512 = vsel %vm1510, %v1511, %v1503
      %v1513 = vsel %vm1506, %v1509, %v1512
      %v1514 = vsel %vm1504, nan, %v1513
      %v1515 = vand.u32 2147483647, %v361
      %vm1516 = vcmp.le.f32.partialorder %v1515, 0.7853982
      %vm1517 = vcmp.lt.s32.totalorder %v361, 0
      %v1518 = vand.u32 %v361, 2139095040
      %v1519 = vshrl.u32 %v1518, 23
      %v1520 = vsub.s32 %v1519, 127
      %v1521 = vand.u32 2147483647, %v361
      %v1522 = vand.u32 %v1521, 8388607
      %v1523 = vor.u32 %v1522, 8388608
      %v1524 = vsub.s32 0, %v1523
      %v1525 = vadd.s32 %v1520, 1
      %vm1526 = vcmp.gt.s32.totalorder %v1525, 0
      %v1527 = vsel %vm1526, %v1525, 0
      %v1528 = vshrl.u32 %v1527, 5
      %v1529 = vand.u32 %v1527, 31
      %v1530 = vsub.s32 32, %v1529
      %v1531 = vshrl.u32 683565275, %v1530
      %v1532 = vshll.u32 683565275, %v1529
      %v1533 = vshrl.u32 2475754826, %v1530
      %v1534 = vor.u32 %v1532, %v1533
      %v1535 = vshll.u32 2475754826, %v1529
      %v1536 = vshrl.u32 2131351028, %v1530
      %v1537 = vor.u32 %v1535, %v1536
      %v1538 = vshll.u32 2131351028, %v1529
      %v1539 = vshrl.u32 2102212464, %v1530
      %v1540 = vor.u32 %v1538, %v1539
      %v1541 = vshll.u32 2102212464, %v1529
      %v1542 = vshrl.u32 920167782, %v1530
      %v1543 = vor.u32 %v1541, %v1542
      %v1544 = vshll.u32 920167782, %v1529
      %v1545 = vshrl.u32 1326507024, %v1530
      %v1546 = vor.u32 %v1544, %v1545
      %vm1547 = vcmp.lt.s32.totalorder %v1528, 1
      %vm1548 = vcmp.lt.s32.totalorder %v1528, 2
      %vm1549 = vcmp.lt.s32.totalorder %v1528, 3
      %vm1550 = vcmp.lt.s32.totalorder %v1528, 4
      %v1551 = vsel %vm1547, %v1531, %v1534
      %v1552 = vsel %vm1550, %v1540, 2102212464
      %v1553 = vsel %vm1549, %v1537, %v1552
      %v1554 = vsel %vm1548, %v1551, %v1553
      %v1555 = vsel %vm1547, %v1534, %v1537
      %v1556 = vsel %vm1550, %v1543, 920167782
      %v1557 = vsel %vm1549, %v1540, %v1556
      %v1558 = vsel %vm1548, %v1555, %v1557
      %v1559 = vsel %vm1547, %v1537, %v1540
      %v1560 = vsel %vm1550, %v1546, 1326507024
      %v1561 = vsel %vm1549, %v1543, %v1560
      %v1562 = vsel %vm1548, %v1559, %v1561
      %v1563 = vshll.u32 %v1523, 8
      %v1564 = vmul.u32.u64.compose %v1563, %v1562
      %v1565 = vextract.low.u32 %v1564
      %v1566 = vextract.high.u32 %v1564
      %v1567 = vmul.u32.u64.compose %v1563, %v1558
      %v1568 = vextract.low.u32 %v1567
      %v1569 = vextract.high.u32 %v1567
      %v1570 = vmul.u32 %v1563, %v1554
      %v1571 = vadd.s32 %v1566, %v1568
      %vm1572 = vc.u32 %v1566, %v1568
      %v1573 = vadd.s32 %v1569, 1
      %v1574 = vsel %vm1572, %v1573, %v1569
      %v1575 = vadd.s32 %v1570, %v1574
      %v1576 = vadd.s32 %v1575, 536870912
      %v1577 = vshrl.u32 %v1576, 30
      %v1578 = vshll.u32 %v1577, 30
      %v1579 = vsub.s32 %v1575, %v1578
      %vm1580 = vcmp.lt.s32.totalorder %v1579, 0
      %v1581 = vsub.s32 0, %v1579
      %v1582 = vsel %vm1580, %v1581, %v1579
      %v1583 = vclz %v1582
      %v1584 = vsub.s32 %v1583, 2
      %vm1585 = vcmp.gt.s32.totalorder 0, %v1584
      %v1586 = vsel %vm1585, 0, %v1584
      %v1587 = vsub.s32 32, %v1586
      %v1588 = vshll.u32 %v1579, %v1586
      %v1589 = vshrl.u32 %v1571, %v1587
      %v1590 = vor.u32 %v1588, %v1589
      %v1591 = vsub.s32 4294967266, %v1586
      %v1592 = vadd.s32 %v1591, 127
      %v1593 = vshll.u32 %v1592, 23
      %v1594 = vor.u32 4788187, %v1593
      %v1595 = vand.u32 2147483647, %v1594
      %v1597 = vcvt.s32.f32 %v1590
      %v1598 = vmul.f32 %v1597, %v1595
      %v1599 = vxor.u32 %v1598, 2147483648
      %v1600 = vsel %vm1517, %v1599, %v1598
      %v1601 = vsub.s32 4, %v1577
      %v1602 = vsel %vm1517, %v1601, %v1577
      %v1603 = vsel %vm1516, %v361, %v1600
      %v1604 = vsel %vm1516, 0, %v1602
      %v1605 = vcosq.f32.pop %v1603
      %v1606 = vsinq.f32.pop %v1603
      %vm1607 = vweird.f32 %v361
      %v1608 = vand.u32 %v1604, 3
      %vm1609 = vcmp.lt.s32.totalorder %v1608, 2
      %vm1610 = vcmp.eq.s32.totalorder %v1608, 0
      %v1611 = vxor.u32 %v1606, 2147483648
      %v1612 = vsel %vm1610, %v1605, %v1611
      %vm1613 = vcmp.eq.s32.totalorder %v1608, 2
      %v1614 = vxor.u32 %v1605, 2147483648
      %v1615 = vsel %vm1613, %v1614, %v1606
      %v1616 = vsel %vm1609, %v1612, %v1615
      %v1617 = vsel %vm1607, nan, %v1616
      %v1618 = vand.u32 2147483647, %v362
      %vm1619 = vcmp.le.f32.partialorder %v1618, 0.7853982
      %vm1620 = vcmp.lt.s32.totalorder %v362, 0
      %v1621 = vand.u32 %v362, 2139095040
      %v1622 = vshrl.u32 %v1621, 23
      %v1623 = vsub.s32 %v1622, 127
      %v1624 = vand.u32 2147483647, %v362
      %v1625 = vand.u32 %v1624, 8388607
      %v1626 = vor.u32 %v1625, 8388608
      %v1627 = vsub.s32 0, %v1626
      %v1628 = vadd.s32 %v1623, 1
      %vm1629 = vcmp.gt.s32.totalorder %v1628, 0
      %v1630 = vsel %vm1629, %v1628, 0
      %v1631 = vshrl.u32 %v1630, 5
      %v1632 = vand.u32 %v1630, 31
      %v1633 = vsub.s32 32, %v1632
      %v1634 = vshrl.u32 683565275, %v1633
      %v1635 = vshll.u32 683565275, %v1632
      %v1636 = vshrl.u32 2475754826, %v1633
      %v1637 = vor.u32 %v1635, %v1636
      %v1638 = vshll.u32 2475754826, %v1632
      %v1639 = vshrl.u32 2131351028, %v1633
      %v1640 = vor.u32 %v1638, %v1639
      %v1641 = vshll.u32 2131351028, %v1632
      %v1642 = vshrl.u32 2102212464, %v1633
      %v1643 = vor.u32 %v1641, %v1642
      %v1644 = vshll.u32 2102212464, %v1632
      %v1645 = vshrl.u32 920167782, %v1633
      %v1646 = vor.u32 %v1644, %v1645
      %v1647 = vshll.u32 920167782, %v1632
      %v1648 = vshrl.u32 1326507024, %v1633
      %v1649 = vor.u32 %v1647, %v1648
      %vm1650 = vcmp.lt.s32.totalorder %v1631, 1
      %vm1651 = vcmp.lt.s32.totalorder %v1631, 2
      %vm1652 = vcmp.lt.s32.totalorder %v1631, 3
      %vm1653 = vcmp.lt.s32.totalorder %v1631, 4
      %v1654 = vsel %vm1650, %v1634, %v1637
      %v1655 = vsel %vm1653, %v1643, 2102212464
      %v1656 = vsel %vm1652, %v1640, %v1655
      %v1657 = vsel %vm1651, %v1654, %v1656
      %v1658 = vsel %vm1650, %v1637, %v1640
      %v1659 = vsel %vm1653, %v1646, 920167782
      %v1660 = vsel %vm1652, %v1643, %v1659
      %v1661 = vsel %vm1651, %v1658, %v1660
      %v1662 = vsel %vm1650, %v1640, %v1643
      %v1663 = vsel %vm1653, %v1649, 1326507024
      %v1664 = vsel %vm1652, %v1646, %v1663
      %v1665 = vsel %vm1651, %v1662, %v1664
      %v1666 = vshll.u32 %v1626, 8
      %v1667 = vmul.u32.u64.compose %v1666, %v1665
      %v1668 = vextract.low.u32 %v1667
      %v1669 = vextract.high.u32 %v1667
      %v1670 = vmul.u32.u64.compose %v1666, %v1661
      %v1671 = vextract.low.u32 %v1670
      %v1672 = vextract.high.u32 %v1670
      %v1673 = vmul.u32 %v1666, %v1657
      %v1674 = vadd.s32 %v1669, %v1671
      %vm1675 = vc.u32 %v1669, %v1671
      %v1676 = vadd.s32 %v1672, 1
      %v1677 = vsel %vm1675, %v1676, %v1672
      %v1678 = vadd.s32 %v1673, %v1677
      %v1679 = vadd.s32 %v1678, 536870912
      %v1680 = vshrl.u32 %v1679, 30
      %v1681 = vshll.u32 %v1680, 30
      %v1682 = vsub.s32 %v1678, %v1681
      %vm1683 = vcmp.lt.s32.totalorder %v1682, 0
      %v1684 = vsub.s32 0, %v1682
      %v1685 = vsel %vm1683, %v1684, %v1682
      %v1686 = vclz %v1685
      %v1687 = vsub.s32 %v1686, 2
      %vm1688 = vcmp.gt.s32.totalorder 0, %v1687
      %v1689 = vsel %vm1688, 0, %v1687
      %v1690 = vsub.s32 32, %v1689
      %v1691 = vshll.u32 %v1682, %v1689
      %v1692 = vshrl.u32 %v1674, %v1690
      %v1693 = vor.u32 %v1691, %v1692
      %v1694 = vsub.s32 4294967266, %v1689
      %v1695 = vadd.s32 %v1694, 127
      %v1696 = vshll.u32 %v1695, 23
      %v1697 = vor.u32 4788187, %v1696
      %v1698 = vand.u32 2147483647, %v1697
      %v1700 = vcvt.s32.f32 %v1693
      %v1701 = vmul.f32 %v1700, %v1698
      %v1702 = vxor.u32 %v1701, 2147483648
      %v1703 = vsel %vm1620, %v1702, %v1701
      %v1704 = vsub.s32 4, %v1680
      %v1705 = vsel %vm1620, %v1704, %v1680
      %v1706 = vsel %vm1619, %v362, %v1703
      %v1707 = vsel %vm1619, 0, %v1705
      %v1708 = vcosq.f32.pop %v1706
      %v1709 = vsinq.f32.pop %v1706
      %vm1710 = vweird.f32 %v362
      %v1711 = vand.u32 %v1707, 3
      %vm1712 = vcmp.lt.s32.totalorder %v1711, 2
      %vm1713 = vcmp.eq.s32.totalorder %v1711, 0
      %v1714 = vxor.u32 %v1709, 2147483648
      %v1715 = vsel %vm1713, %v1708, %v1714
      %vm1716 = vcmp.eq.s32.totalorder %v1711, 2
      %v1717 = vxor.u32 %v1708, 2147483648
      %v1718 = vsel %vm1716, %v1717, %v1709
      %v1719 = vsel %vm1712, %v1715, %v1718
      %v1720 = vsel %vm1710, nan, %v1719
      %v1721 = vand.u32 2147483647, %v363
      %vm1722 = vcmp.le.f32.partialorder %v1721, 0.7853982
      %vm1723 = vcmp.lt.s32.totalorder %v363, 0
      %v1724 = vand.u32 %v363, 2139095040
      %v1725 = vshrl.u32 %v1724, 23
      %v1726 = vsub.s32 %v1725, 127
      %v1727 = vand.u32 2147483647, %v363
      %v1728 = vand.u32 %v1727, 8388607
      %v1729 = vor.u32 %v1728, 8388608
      %v1730 = vsub.s32 0, %v1729
      %v1731 = vadd.s32 %v1726, 1
      %vm1732 = vcmp.gt.s32.totalorder %v1731, 0
      %v1733 = vsel %vm1732, %v1731, 0
      %v1734 = vshrl.u32 %v1733, 5
      %v1735 = vand.u32 %v1733, 31
      %v1736 = vsub.s32 32, %v1735
      %v1737 = vshrl.u32 683565275, %v1736
      %v1738 = vshll.u32 683565275, %v1735
      %v1739 = vshrl.u32 2475754826, %v1736
      %v1740 = vor.u32 %v1738, %v1739
      %v1741 = vshll.u32 2475754826, %v1735
      %v1742 = vshrl.u32 2131351028, %v1736
      %v1743 = vor.u32 %v1741, %v1742
      %v1744 = vshll.u32 2131351028, %v1735
      %v1745 = vshrl.u32 2102212464, %v1736
      %v1746 = vor.u32 %v1744, %v1745
      %v1747 = vshll.u32 2102212464, %v1735
      %v1748 = vshrl.u32 920167782, %v1736
      %v1749 = vor.u32 %v1747, %v1748
      %v1750 = vshll.u32 920167782, %v1735
      %v1751 = vshrl.u32 1326507024, %v1736
      %v1752 = vor.u32 %v1750, %v1751
      %vm1753 = vcmp.lt.s32.totalorder %v1734, 1
      %vm1754 = vcmp.lt.s32.totalorder %v1734, 2
      %vm1755 = vcmp.lt.s32.totalorder %v1734, 3
      %vm1756 = vcmp.lt.s32.totalorder %v1734, 4
      %v1757 = vsel %vm1753, %v1737, %v1740
      %v1758 = vsel %vm1756, %v1746, 2102212464
      %v1759 = vsel %vm1755, %v1743, %v1758
      %v1760 = vsel %vm1754, %v1757, %v1759
      %v1761 = vsel %vm1753, %v1740, %v1743
      %v1762 = vsel %vm1756, %v1749, 920167782
      %v1763 = vsel %vm1755, %v1746, %v1762
      %v1764 = vsel %vm1754, %v1761, %v1763
      %v1765 = vsel %vm1753, %v1743, %v1746
      %v1766 = vsel %vm1756, %v1752, 1326507024
      %v1767 = vsel %vm1755, %v1749, %v1766
      %v1768 = vsel %vm1754, %v1765, %v1767
      %v1769 = vshll.u32 %v1729, 8
      %v1770 = vmul.u32.u64.compose %v1769, %v1768
      %v1771 = vextract.low.u32 %v1770
      %v1772 = vextract.high.u32 %v1770
      %v1773 = vmul.u32.u64.compose %v1769, %v1764
      %v1774 = vextract.low.u32 %v1773
      %v1775 = vextract.high.u32 %v1773
      %v1776 = vmul.u32 %v1769, %v1760
      %v1777 = vadd.s32 %v1772, %v1774
      %vm1778 = vc.u32 %v1772, %v1774
      %v1779 = vadd.s32 %v1775, 1
      %v1780 = vsel %vm1778, %v1779, %v1775
      %v1781 = vadd.s32 %v1776, %v1780
      %v1782 = vadd.s32 %v1781, 536870912
      %v1783 = vshrl.u32 %v1782, 30
      %v1784 = vshll.u32 %v1783, 30
      %v1785 = vsub.s32 %v1781, %v1784
      %vm1786 = vcmp.lt.s32.totalorder %v1785, 0
      %v1787 = vsub.s32 0, %v1785
      %v1788 = vsel %vm1786, %v1787, %v1785
      %v1789 = vclz %v1788
      %v1790 = vsub.s32 %v1789, 2
      %vm1791 = vcmp.gt.s32.totalorder 0, %v1790
      %v1792 = vsel %vm1791, 0, %v1790
      %v1793 = vsub.s32 32, %v1792
      %v1794 = vshll.u32 %v1785, %v1792
      %v1795 = vshrl.u32 %v1777, %v1793
      %v1796 = vor.u32 %v1794, %v1795
      %v1797 = vsub.s32 4294967266, %v1792
      %v1798 = vadd.s32 %v1797, 127
      %v1799 = vshll.u32 %v1798, 23
      %v1800 = vor.u32 4788187, %v1799
      %v1801 = vand.u32 2147483647, %v1800
      %v1803 = vcvt.s32.f32 %v1796
      %v1804 = vmul.f32 %v1803, %v1801
      %v1805 = vxor.u32 %v1804, 2147483648
      %v1806 = vsel %vm1723, %v1805, %v1804
      %v1807 = vsub.s32 4, %v1783
      %v1808 = vsel %vm1723, %v1807, %v1783
      %v1809 = vsel %vm1722, %v363, %v1806
      %v1810 = vsel %vm1722, 0, %v1808
      %v1811 = vcosq.f32.pop %v1809
      %v1812 = vsinq.f32.pop %v1809
      %vm1813 = vweird.f32 %v363
      %v1814 = vand.u32 %v1810, 3
      %vm1815 = vcmp.lt.s32.totalorder %v1814, 2
      %vm1816 = vcmp.eq.s32.totalorder %v1814, 0
      %v1817 = vxor.u32 %v1812, 2147483648
      %v1818 = vsel %vm1816, %v1811, %v1817
      %vm1819 = vcmp.eq.s32.totalorder %v1814, 2
      %v1820 = vxor.u32 %v1811, 2147483648
      %v1821 = vsel %vm1819, %v1820, %v1812
      %v1822 = vsel %vm1815, %v1818, %v1821
      %v1823 = vsel %vm1813, nan, %v1822
      %v1824 = vand.u32 2147483647, %v364
      %vm1825 = vcmp.le.f32.partialorder %v1824, 0.7853982
      %vm1826 = vcmp.lt.s32.totalorder %v364, 0
      %v1827 = vand.u32 %v364, 2139095040
      %v1828 = vshrl.u32 %v1827, 23
      %v1829 = vsub.s32 %v1828, 127
      %v1830 = vand.u32 2147483647, %v364
      %v1831 = vand.u32 %v1830, 8388607
      %v1832 = vor.u32 %v1831, 8388608
      %v1833 = vsub.s32 0, %v1832
      %v1834 = vadd.s32 %v1829, 1
      %vm1835 = vcmp.gt.s32.totalorder %v1834, 0
      %v1836 = vsel %vm1835, %v1834, 0
      %v1837 = vshrl.u32 %v1836, 5
      %v1838 = vand.u32 %v1836, 31
      %v1839 = vsub.s32 32, %v1838
      %v1840 = vshrl.u32 683565275, %v1839
      %v1841 = vshll.u32 683565275, %v1838
      %v1842 = vshrl.u32 2475754826, %v1839
      %v1843 = vor.u32 %v1841, %v1842
      %v1844 = vshll.u32 2475754826, %v1838
      %v1845 = vshrl.u32 2131351028, %v1839
      %v1846 = vor.u32 %v1844, %v1845
      %v1847 = vshll.u32 2131351028, %v1838
      %v1848 = vshrl.u32 2102212464, %v1839
      %v1849 = vor.u32 %v1847, %v1848
      %v1850 = vshll.u32 2102212464, %v1838
      %v1851 = vshrl.u32 920167782, %v1839
      %v1852 = vor.u32 %v1850, %v1851
      %v1853 = vshll.u32 920167782, %v1838
      %v1854 = vshrl.u32 1326507024, %v1839
      %v1855 = vor.u32 %v1853, %v1854
      %vm1856 = vcmp.lt.s32.totalorder %v1837, 1
      %vm1857 = vcmp.lt.s32.totalorder %v1837, 2
      %vm1858 = vcmp.lt.s32.totalorder %v1837, 3
      %vm1859 = vcmp.lt.s32.totalorder %v1837, 4
      %v1860 = vsel %vm1856, %v1840, %v1843
      %v1861 = vsel %vm1859, %v1849, 2102212464
      %v1862 = vsel %vm1858, %v1846, %v1861
      %v1863 = vsel %vm1857, %v1860, %v1862
      %v1864 = vsel %vm1856, %v1843, %v1846
      %v1865 = vsel %vm1859, %v1852, 920167782
      %v1866 = vsel %vm1858, %v1849, %v1865
      %v1867 = vsel %vm1857, %v1864, %v1866
      %v1868 = vsel %vm1856, %v1846, %v1849
      %v1869 = vsel %vm1859, %v1855, 1326507024
      %v1870 = vsel %vm1858, %v1852, %v1869
      %v1871 = vsel %vm1857, %v1868, %v1870
      %v1872 = vshll.u32 %v1832, 8
      %v1873 = vmul.u32.u64.compose %v1872, %v1871
      %v1874 = vextract.low.u32 %v1873
      %v1875 = vextract.high.u32 %v1873
      %v1876 = vmul.u32.u64.compose %v1872, %v1867
      %v1877 = vextract.low.u32 %v1876
      %v1878 = vextract.high.u32 %v1876
      %v1879 = vmul.u32 %v1872, %v1863
      %v1880 = vadd.s32 %v1875, %v1877
      %vm1881 = vc.u32 %v1875, %v1877
      %v1882 = vadd.s32 %v1878, 1
      %v1883 = vsel %vm1881, %v1882, %v1878
      %v1884 = vadd.s32 %v1879, %v1883
      %v1885 = vadd.s32 %v1884, 536870912
      %v1886 = vshrl.u32 %v1885, 30
      %v1887 = vshll.u32 %v1886, 30
      %v1888 = vsub.s32 %v1884, %v1887
      %vm1889 = vcmp.lt.s32.totalorder %v1888, 0
      %v1890 = vsub.s32 0, %v1888
      %v1891 = vsel %vm1889, %v1890, %v1888
      %v1892 = vclz %v1891
      %v1893 = vsub.s32 %v1892, 2
      %vm1894 = vcmp.gt.s32.totalorder 0, %v1893
      %v1895 = vsel %vm1894, 0, %v1893
      %v1896 = vsub.s32 32, %v1895
      %v1897 = vshll.u32 %v1888, %v1895
      %v1898 = vshrl.u32 %v1880, %v1896
      %v1899 = vor.u32 %v1897, %v1898
      %v1900 = vsub.s32 4294967266, %v1895
      %v1901 = vadd.s32 %v1900, 127
      %v1902 = vshll.u32 %v1901, 23
      %v1903 = vor.u32 4788187, %v1902
      %v1904 = vand.u32 2147483647, %v1903
      %v1906 = vcvt.s32.f32 %v1899
      %v1907 = vmul.f32 %v1906, %v1904
      %v1908 = vxor.u32 %v1907, 2147483648
      %v1909 = vsel %vm1826, %v1908, %v1907
      %v1910 = vsub.s32 4, %v1886
      %v1911 = vsel %vm1826, %v1910, %v1886
      %v1912 = vsel %vm1825, %v364, %v1909
      %v1913 = vsel %vm1825, 0, %v1911
      %v1914 = vcosq.f32.pop %v1912
      %v1915 = vsinq.f32.pop %v1912
      %vm1916 = vweird.f32 %v364
      %v1917 = vand.u32 %v1913, 3
      %vm1918 = vcmp.lt.s32.totalorder %v1917, 2
      %vm1919 = vcmp.eq.s32.totalorder %v1917, 0
      %v1920 = vxor.u32 %v1915, 2147483648
      %v1921 = vsel %vm1919, %v1914, %v1920
      %vm1922 = vcmp.eq.s32.totalorder %v1917, 2
      %v1923 = vxor.u32 %v1914, 2147483648
      %v1924 = vsel %vm1922, %v1923, %v1915
      %v1925 = vsel %vm1918, %v1921, %v1924
      %v1926 = vsel %vm1916, nan, %v1925
      %v1927 = vand.u32 2147483647, %v365
      %vm1928 = vcmp.le.f32.partialorder %v1927, 0.7853982
      %vm1929 = vcmp.lt.s32.totalorder %v365, 0
      %v1930 = vand.u32 %v365, 2139095040
      %v1931 = vshrl.u32 %v1930, 23
      %v1932 = vsub.s32 %v1931, 127
      %v1933 = vand.u32 2147483647, %v365
      %v1934 = vand.u32 %v1933, 8388607
      %v1935 = vor.u32 %v1934, 8388608
      %v1936 = vsub.s32 0, %v1935
      %v1937 = vadd.s32 %v1932, 1
      %vm1938 = vcmp.gt.s32.totalorder %v1937, 0
      %v1939 = vsel %vm1938, %v1937, 0
      %v1940 = vshrl.u32 %v1939, 5
      %v1941 = vand.u32 %v1939, 31
      %v1942 = vsub.s32 32, %v1941
      %v1943 = vshrl.u32 683565275, %v1942
      %v1944 = vshll.u32 683565275, %v1941
      %v1945 = vshrl.u32 2475754826, %v1942
      %v1946 = vor.u32 %v1944, %v1945
      %v1947 = vshll.u32 2475754826, %v1941
      %v1948 = vshrl.u32 2131351028, %v1942
      %v1949 = vor.u32 %v1947, %v1948
      %v1950 = vshll.u32 2131351028, %v1941
      %v1951 = vshrl.u32 2102212464, %v1942
      %v1952 = vor.u32 %v1950, %v1951
      %v1953 = vshll.u32 2102212464, %v1941
      %v1954 = vshrl.u32 920167782, %v1942
      %v1955 = vor.u32 %v1953, %v1954
      %v1956 = vshll.u32 920167782, %v1941
      %v1957 = vshrl.u32 1326507024, %v1942
      %v1958 = vor.u32 %v1956, %v1957
      %vm1959 = vcmp.lt.s32.totalorder %v1940, 1
      %vm1960 = vcmp.lt.s32.totalorder %v1940, 2
      %vm1961 = vcmp.lt.s32.totalorder %v1940, 3
      %vm1962 = vcmp.lt.s32.totalorder %v1940, 4
      %v1963 = vsel %vm1959, %v1943, %v1946
      %v1964 = vsel %vm1962, %v1952, 2102212464
      %v1965 = vsel %vm1961, %v1949, %v1964
      %v1966 = vsel %vm1960, %v1963, %v1965
      %v1967 = vsel %vm1959, %v1946, %v1949
      %v1968 = vsel %vm1962, %v1955, 920167782
      %v1969 = vsel %vm1961, %v1952, %v1968
      %v1970 = vsel %vm1960, %v1967, %v1969
      %v1971 = vsel %vm1959, %v1949, %v1952
      %v1972 = vsel %vm1962, %v1958, 1326507024
      %v1973 = vsel %vm1961, %v1955, %v1972
      %v1974 = vsel %vm1960, %v1971, %v1973
      %v1975 = vshll.u32 %v1935, 8
      %v1976 = vmul.u32.u64.compose %v1975, %v1974
      %v1977 = vextract.low.u32 %v1976
      %v1978 = vextract.high.u32 %v1976
      %v1979 = vmul.u32.u64.compose %v1975, %v1970
      %v1980 = vextract.low.u32 %v1979
      %v1981 = vextract.high.u32 %v1979
      %v1982 = vmul.u32 %v1975, %v1966
      %v1983 = vadd.s32 %v1978, %v1980
      %vm1984 = vc.u32 %v1978, %v1980
      %v1985 = vadd.s32 %v1981, 1
      %v1986 = vsel %vm1984, %v1985, %v1981
      %v1987 = vadd.s32 %v1982, %v1986
      %v1988 = vadd.s32 %v1987, 536870912
      %v1989 = vshrl.u32 %v1988, 30
      %v1990 = vshll.u32 %v1989, 30
      %v1991 = vsub.s32 %v1987, %v1990
      %vm1992 = vcmp.lt.s32.totalorder %v1991, 0
      %v1993 = vsub.s32 0, %v1991
      %v1994 = vsel %vm1992, %v1993, %v1991
      %v1995 = vclz %v1994
      %v1996 = vsub.s32 %v1995, 2
      %vm1997 = vcmp.gt.s32.totalorder 0, %v1996
      %v1998 = vsel %vm1997, 0, %v1996
      %v1999 = vsub.s32 32, %v1998
      %v2000 = vshll.u32 %v1991, %v1998
      %v2001 = vshrl.u32 %v1983, %v1999
      %v2002 = vor.u32 %v2000, %v2001
      %v2003 = vsub.s32 4294967266, %v1998
      %v2004 = vadd.s32 %v2003, 127
      %v2005 = vshll.u32 %v2004, 23
      %v2006 = vor.u32 4788187, %v2005
      %v2007 = vand.u32 2147483647, %v2006
      %v2009 = vcvt.s32.f32 %v2002
      %v2010 = vmul.f32 %v2009, %v2007
      %v2011 = vxor.u32 %v2010, 2147483648
      %v2012 = vsel %vm1929, %v2011, %v2010
      %v2013 = vsub.s32 4, %v1989
      %v2014 = vsel %vm1929, %v2013, %v1989
      %v2015 = vsel %vm1928, %v365, %v2012
      %v2016 = vsel %vm1928, 0, %v2014
      %v2017 = vcosq.f32.pop %v2015
      %v2018 = vsinq.f32.pop %v2015
      %vm2019 = vweird.f32 %v365
      %v2020 = vand.u32 %v2016, 3
      %vm2021 = vcmp.lt.s32.totalorder %v2020, 2
      %vm2022 = vcmp.eq.s32.totalorder %v2020, 0
      %v2023 = vxor.u32 %v2018, 2147483648
      %v2024 = vsel %vm2022, %v2017, %v2023
      %vm2025 = vcmp.eq.s32.totalorder %v2020, 2
      %v2026 = vxor.u32 %v2017, 2147483648
      %v2027 = vsel %vm2025, %v2026, %v2018
      %v2028 = vsel %vm2021, %v2024, %v2027
      %v2029 = vsel %vm2019, nan, %v2028
      %2030 = vst [vmem:[%s181 + $0x40] sm:$0xff] %v1308
      %2031 = vst [vmem:[%s181 + $0x48] sm:$0xff] %v1411
      %2032 = vst [vmem:[%s181 + $0x50] sm:$0xff] %v1514
      %2033 = vst [vmem:[%s181 + $0x58] sm:$0xff] %v1617
      %2034 = vst [vmem:[%s181 + $0x60] sm:$0xff] %v1720
      %2035 = vst [vmem:[%s181 + $0x68] sm:$0xff] %v1823
      %2036 = vst [vmem:[%s181 + $0x70] sm:$0xff] %v1926
      %2037 = vst [vmem:[%s181 + $0x78] sm:$0xff] %v2029
      %s2038 = smul.u32 2, %s18
      %p2039 = scmp.lt.s32.totalorder %s17, 1
      %s2040 = scalar_select %p2039, %s17, 1
      %p2041 = scmp.lt.s32.totalorder %s2038, 1
      %s2042 = scalar_select %p2041, %s2038, 1
      %s2043 = smul.addr %s2040, 16
      %s2044 = sadd.s32 %s2042, %s2043
      %s2045 = smul.addr %s2044, 8
      %s2046 = scalar_lea.vmem %s2, %s2045
      // Predicated region
      $region29: #{_lambda_.1} parent=27 // pred_check
        %p2047 = pneg %p94
      $region30: #{_lambda_.1} parent=27 // pred_check_branch
        %2049 = sbr.rel (%p2047) target = $region32
      $region31: #{_lambda_.1} parent=27 // pred_region
        %s2050 = smul.u32 2, %s18
      $region32: #{_lambda_.1} parent=27 // pred_fallthru
        _
    $region28: #{_lambda_.1} parent=5 // pred_fallthru
      _
    %p2051 = scmp.le.s32.totalorder 2, %s8
    // Predicated region
    $region33: #{_lambda_.1} parent=5 // pred_check
      %p2052 = pneg %p2051
    $region34: #{_lambda_.1} parent=5 // pred_check_branch
      %2054 = sbr.rel (%p2052) target = $region36
    $region35: #{_lambda_.1} parent=5 // pred_region
      %s2055 = ssub.s32 %s8, 2
      // Predicated region
      $region37: #{_lambda_.1} parent=35 // pred_check
        %p2056 = pneg %p100
      $region38: #{_lambda_.1} parent=35 // pred_check_branch
        %2058 = sbr.rel (%p2056) target = $region40
      $region39: #{_lambda_.1} parent=35 // pred_region
        %s2059 = smul.u32 2, %s20
        %p2060 = scmp.lt.s32.totalorder %s19, 1
        %s2061 = scalar_select %p2060, %s19, 1
        %p2062 = scmp.lt.s32.totalorder %s2059, 1
        %s2063 = scalar_select %p2062, %s2059, 1
        %s2064 = smul.addr %s2061, 16
        %s2065 = sadd.s32 %s2063, %s2064
        %s2066 = smul.addr %s2065, 8
        %s2067 = scalar_lea.vmem %s2, %s2066
      $region40: #{_lambda_.1} parent=35 // pred_fallthru
        _
    $region36: #{_lambda_.1} parent=5 // pred_fallthru
      _
  $region6: #{_lambda_.1} parent=0 // loop_footer
    %s12 = sadd.s32 1, %s8
  $region7: #{_lambda_.1} parent=0 // loop_footer_branch
    %7 = sbr.rel target = $region3
  $region8: #{_lambda_.1} parent=0 // loop_exit
    _

</llo_original>
